<compile_context>
chip_gen: v6e
topology: v6e:2x2x1
jax: 0.10.0
libtpu: 0.0.40
codegen_flags: <defaults>
</compile_context>

<pallas_src>
import jax
import jax.numpy as jnp
from jax.experimental import pallas as pl
from jax.experimental.pallas import tpu as pltpu


# ------------------------------ fused kernel --------------------------------


def _make_fused_kernel(num_layers, hidden):
    H = hidden
    f32 = jnp.float32
    bf16 = jnp.bfloat16

    def kernel(*refs):
        (x_robot_ref, x_object_ref,
         adj_ro_ref, adj_or_ref, adj_loops_ref, adj_surr_ref) = refs[0:6]
        layer_refs = refs[6:6 + 3 * num_layers]
        w_lin_ref = refs[6 + 3 * num_layers]
        b_lin_ref = refs[6 + 3 * num_layers + 1]
        out_ref = refs[-1]

        x_r = x_robot_ref[...]          # (Nr, Fr) f32
        x_o = x_object_ref[...]         # (No, Fo) f32
        adj_ro = adj_ro_ref[...]        # (No, Nr) f32 edge counts, robot -> object
        adj_or = adj_or_ref[...]        # (Nr, No)               object -> robot
        adj_lp = adj_loops_ref[...]     # (No, No)               object -> object ('loops')
        adj_su = adj_surr_ref[...]      # (No, No)               object -> object ('surrounds')

        # Degrees (duplicate edges counted) + EUP reciprocals; reused every layer.
        inv_deg_lp = pl.reciprocal(
            jnp.maximum(jnp.sum(adj_lp, axis=-1, keepdims=True), f32(1.0)), approx=True)
        inv_deg_or = pl.reciprocal(
            jnp.maximum(jnp.sum(adj_or, axis=-1, keepdims=True), f32(1.0)), approx=True)
        adj_lp_b = adj_lp.astype(bf16)
        adj_or_b = adj_or.astype(bf16)

        def gat(a_d, a_s_col, h_s, adj_counts, bias):
            """Single-head GAT: masked, duplicate-aware softmax over sources per dst."""
            a_s_row = jnp.sum(a_s_col, axis=-1)[None, :]           # (1, Ns)
            e = a_d + a_s_row                                      # (Nd, Ns) f32
            e = jnp.where(e > 0, e, 0.2 * e)                       # LeakyReLU(0.2)
            mask = adj_counts > 0.0
            e_m = jnp.where(mask, e, f32(-1e30))
            m = jnp.max(e_m, axis=-1, keepdims=True)
            p = adj_counts * jnp.exp(e_m - m)                      # counts weight dup edges
            denom = jnp.sum(p, axis=-1, keepdims=True)
            attn = p * pl.reciprocal(jnp.maximum(denom, f32(1e-30)), approx=True)
            out = jnp.dot(attn.astype(bf16), h_s.astype(bf16),
                          preferred_element_type=f32)
            return out + bias                                      # isolated dst -> bias

        def sage(h_nbr, adj_b, inv_deg, b_l, h_root):
            """SAGE (mean aggr): projection already applied (mean commutes with linear)."""
            agg = jnp.dot(adj_b, h_nbr.astype(bf16), preferred_element_type=f32)
            return agg * inv_deg + b_l + h_root

        for l in range(num_layers):
            w_obj = layer_refs[3 * l][...]       # (Fo_l, 4H+3)
            w_rob = layer_refs[3 * l + 1][...]   # (Fr_l, 2H+1)
            biases = layer_refs[3 * l + 2][...]  # (1, 4H)

            # One lane-dense projection per node type feeds all four edge-type convs.
            h_o = jnp.dot(x_o.astype(bf16), w_obj.astype(bf16),
                          preferred_element_type=f32)              # (No, 4H+3)
            h_r = jnp.dot(x_r.astype(bf16), w_rob.astype(bf16),
                          preferred_element_type=f32)              # (Nr, 2H+1)

            hs_su = h_o[:, 0 * H:1 * H]          # GAT 'surrounds' src projection
            hl_lp = h_o[:, 1 * H:2 * H]          # SAGE 'loops'    neighbor projection
            hr_lp = h_o[:, 2 * H:3 * H]          # SAGE 'loops'    root projection
            hl_or = h_o[:, 3 * H:4 * H]          # SAGE obj->robot neighbor projection
            ad_rg = h_o[:, 4 * H:4 * H + 1]      # GAT robot->obj  a_dst
            as_su = h_o[:, 4 * H + 1:4 * H + 2]  # GAT 'surrounds' a_src
            ad_su = h_o[:, 4 * H + 2:4 * H + 3]  # GAT 'surrounds' a_dst

            hs_rg = h_r[:, 0 * H:1 * H]          # GAT robot->obj  src projection
            hr_or = h_r[:, 1 * H:2 * H]          # SAGE obj->robot root projection
            as_rg = h_r[:, 2 * H:2 * H + 1]      # GAT robot->obj  a_src

            b_g_rg = biases[:, 0 * H:1 * H]
            b_g_su = biases[:, 1 * H:2 * H]
            b_s_lp = biases[:, 2 * H:3 * H]
            b_s_or = biases[:, 3 * H:4 * H]

            o_gat_rg = gat(ad_rg, as_rg, hs_rg, adj_ro, b_g_rg)            # -> object
            o_gat_su = gat(ad_su, as_su, hs_su, adj_su, b_g_su)            # -> object
            o_sage_lp = sage(hl_lp, adj_lp_b, inv_deg_lp, b_s_lp, hr_lp)   # -> object
            o_sage_or = sage(hl_or, adj_or_b, inv_deg_or, b_s_or, hr_or)   # -> robot

            # HeteroConv(aggr='sum') per destination node type, then ReLU.
            x_o = jnp.maximum(o_gat_rg + o_gat_su + o_sage_lp, f32(0.0))
            x_r = jnp.maximum(o_sage_or, f32(0.0))

        # Final Linear on 'object' — lane-dense (>=128 col) padded output slab.
        out = jnp.dot(x_o.astype(bf16), w_lin_ref[...].astype(bf16),
                      preferred_element_type=f32) + b_lin_ref[...]
        out_ref[...] = out.astype(out_ref.dtype)

    return kernel


# --------------------------- host-side weight packing ------------------------


def _pack_layer(layer):
    """Concatenate all per-node-type projections (and folded attention columns)."""
    g_rg, g_su = layer["gat_rg"], layer["gat_oo"]
    s_lp, s_or = layer["sage_oo"], layer["sage_or"]
    w_obj = jnp.concatenate(
        [g_su["w_src"], s_lp["w_l"], s_lp["w_r"], s_or["w_l"],
         g_rg["w_dst"] @ g_rg["att_dst"].T,     # folded a_dst column (robot->object GAT)
         g_su["w_src"] @ g_su["att_src"].T,     # folded a_src column ('surrounds' GAT)
         g_su["w_dst"] @ g_su["att_dst"].T],    # folded a_dst column ('surrounds' GAT)
        axis=1)                                 # (Fo, 4H+3)
    w_rob = jnp.concatenate(
        [g_rg["w_src"], s_or["w_r"],
         g_rg["w_src"] @ g_rg["att_src"].T],    # folded a_src column (robot->object GAT)
        axis=1)                                 # (Fr, 2H+1)
    biases = jnp.concatenate(
        [g_rg["bias"], g_su["bias"], s_lp["b_l"], s_or["b_l"]], axis=1)  # (1, 4H)
    return w_obj, w_rob, biases


def _pack_lin(lin):
    """Zero-pad the final Linear to a lane-dense (>=128) output width."""
    w, b = lin["w"], lin["b"]
    out_ch = w.shape[1]
    pad_cols = max(128, ((out_ch + 127) // 128) * 128)
    w_pad = jnp.zeros((w.shape[0], pad_cols), jnp.float32).at[:, :out_ch].set(w)
    b_pad = jnp.zeros((1, pad_cols), jnp.float32).at[:, :out_ch].set(b)
    return w_pad, b_pad, pad_cols


# ------------------------------- forward pass --------------------------------


@jax.jit
def hetero_gnn_forward(params, x_robot, x_object, adj_ro, adj_or, adj_loops, adj_surr):
    num_layers = len(params["layers"])
    hidden = params["lin"]["w"].shape[0]
    out_ch = params["lin"]["w"].shape[1]

    packed = []
    for layer in params["layers"]:
        packed.extend(_pack_layer(layer))
    w_lin_pad, b_lin_pad, pad_cols = _pack_lin(params["lin"])

    inputs = [x_robot, x_object, adj_ro, adj_or, adj_loops, adj_surr,
              *packed, w_lin_pad, b_lin_pad]

    kernel = _make_fused_kernel(num_layers, hidden)
    n_object = x_object.shape[0]
    out_pad = pl.pallas_call(
        kernel,
        out_shape=jax.ShapeDtypeStruct((n_object, pad_cols), jnp.float32),
        in_specs=[pl.BlockSpec(memory_space=pltpu.MemorySpace.VMEM)] * len(inputs),
        out_specs=pl.BlockSpec(memory_space=pltpu.MemorySpace.VMEM),
    )(*inputs)
    return out_pad[:, :out_ch]


# ------------------------------ params & graph glue ---------------------------


def _glorot(key, shape):
    fan_in, fan_out = shape
    lim = (6.0 / (fan_in + fan_out)) ** 0.5
    return jax.random.uniform(key, shape, jnp.float32, -lim, lim)


def init_params(key, f_robot, f_object, hidden, out_channels, num_layers):
    params = {"layers": []}
    for l in range(num_layers):
        fr = f_robot if l == 0 else hidden
        fo = f_object if l == 0 else hidden
        ks = jax.random.split(jax.random.fold_in(key, l), 12)
        layer = {
            # ('robot','grasps','object') GATConv
            "gat_rg": {
                "w_src": _glorot(ks[0], (fr, hidden)),
                "w_dst": _glorot(ks[1], (fo, hidden)),
                "att_src": _glorot(ks[2], (1, hidden)),
                "att_dst": _glorot(ks[3], (1, hidden)),
                "bias": jnp.zeros((1, hidden), jnp.float32),
            },
            # ('object','grasps','robot') SAGEConv
            "sage_or": {
                "w_l": _glorot(ks[4], (fo, hidden)),
                "b_l": jnp.zeros((1, hidden), jnp.float32),
                "w_r": _glorot(ks[5], (fr, hidden)),
            },
            # ('object','loops','object') SAGEConv
            "sage_oo": {
                "w_l": _glorot(ks[6], (fo, hidden)),
                "b_l": jnp.zeros((1, hidden), jnp.float32),
                "w_r": _glorot(ks[7], (fo, hidden)),
            },
            # ('object','surrounds','object') GATConv
            "gat_oo": {
                "w_src": _glorot(ks[8], (fo, hidden)),
                "w_dst": _glorot(ks[9], (fo, hidden)),
                "att_src": _glorot(ks[10], (1, hidden)),
                "att_dst": _glorot(ks[11], (1, hidden)),
                "bias": jnp.zeros((1, hidden), jnp.float32),
            },
        }
        params["layers"].append(layer)
    kf = jax.random.fold_in(key, 1000)
    params["lin"] = {
        "w": _glorot(kf, (hidden, out_channels)),
        "b": jnp.zeros((1, out_channels), jnp.float32),
    }
    return params


def edge_index_to_adj(edge_index, n_src, n_dst):
    """edge_index: (2, E) int32, row0=src, row1=dst -> dense (n_dst, n_src) edge COUNTS.

    Counting duplicates (instead of a {0,1} mask) preserves PyG's treatment of
    repeated edges in both the GAT softmax and the SAGE mean.
    """
    src, dst = edge_index[0], edge_index[1]
    adj = jnp.zeros((n_dst, n_src), jnp.float32)
    return adj.at[dst, src].add(1.0)


# ---------------------------------- main -------------------------------------

if __name__ == "__main__":
    key = jax.random.PRNGKey(0)

    N_ROBOT, N_OBJECT = 8, 16
    F_ROBOT, F_OBJECT = 16, 16      # lazy (-1) in_channels of layer 0
    HIDDEN, OUT_CH, NUM_LAYERS = 32, 8, 2
    N_EDGES = 24

    k_xr, k_xo, k_e1, k_e2, k_e3, k_e4, k_p = jax.random.split(key, 7)

    x_robot = jax.random.normal(k_xr, (N_ROBOT, F_ROBOT), jnp.float32)
    x_object = jax.random.normal(k_xo, (N_OBJECT, F_OBJECT), jnp.float32)

    def rand_edges(k, n_src, n_dst):
        ks, kd = jax.random.split(k)
        src = jax.random.randint(ks, (N_EDGES,), 0, n_src, jnp.int32)
        dst = jax.random.randint(kd, (N_EDGES,), 0, n_dst, jnp.int32)
        return jnp.stack([src, dst], axis=0)

    ei_robot_grasps_object = rand_edges(k_e1, N_ROBOT, N_OBJECT)
    ei_object_grasps_robot = rand_edges(k_e2, N_OBJECT, N_ROBOT)
    ei_object_loops_object = rand_edges(k_e3, N_OBJECT, N_OBJECT)
    ei_object_surrounds_object = rand_edges(k_e4, N_OBJECT, N_OBJECT)

    # edge_index -> dense adjacency counts (plain-JAX glue; irregular scatter).
    adj_ro = edge_index_to_adj(ei_robot_grasps_object, N_ROBOT, N_OBJECT)
    adj_or = edge_index_to_adj(ei_object_grasps_robot, N_OBJECT, N_ROBOT)
    adj_loops = edge_index_to_adj(ei_object_loops_object, N_OBJECT, N_OBJECT)
    adj_surr = edge_index_to_adj(ei_object_surrounds_object, N_OBJECT, N_OBJECT)

    params = init_params(k_p, F_ROBOT, F_OBJECT, HIDDEN, OUT_CH, NUM_LAYERS)

    out = hetero_gnn_forward(params, x_robot, x_object,
                             adj_ro, adj_or, adj_loops, adj_surr)
    out = jax.block_until_ready(out)
    assert out.shape == (N_OBJECT, OUT_CH)
    assert bool(jnp.all(jnp.isfinite(out)))
    print("KERNEL_OK")
</pallas_src>

<mosaic_0001>
module attributes {stable_mosaic.version = 11 : i64} {
  func.func @kernel(%arg0: memref<8x16xf32, #tpu.memory_space<vmem>>, %arg1: memref<16x16xf32, #tpu.memory_space<vmem>>, %arg2: memref<16x8xf32, #tpu.memory_space<vmem>>, %arg3: memref<8x16xf32, #tpu.memory_space<vmem>>, %arg4: memref<16x16xf32, #tpu.memory_space<vmem>>, %arg5: memref<16x16xf32, #tpu.memory_space<vmem>>, %arg6: memref<16x131xf32, #tpu.memory_space<vmem>>, %arg7: memref<16x65xf32, #tpu.memory_space<vmem>>, %arg8: memref<1x128xf32, #tpu.memory_space<vmem>>, %arg9: memref<32x131xf32, #tpu.memory_space<vmem>>, %arg10: memref<32x65xf32, #tpu.memory_space<vmem>>, %arg11: memref<1x128xf32, #tpu.memory_space<vmem>>, %arg12: memref<32x128xf32, #tpu.memory_space<vmem>>, %arg13: memref<1x128xf32, #tpu.memory_space<vmem>>, %arg14: memref<16x128xf32, #tpu.memory_space<vmem>>) attributes {dimension_semantics = [], scalar_prefetch = 0 : i64, scratch_operands = 0 : i64, tpu.core_type = #tpu.core_type<tc>} {
    %c0 = arith.constant 0 : index
    %c0_0 = arith.constant 0 : index
    %0 = vector.load %arg0[%c0, %c0_0] : memref<8x16xf32, #tpu.memory_space<vmem>>, vector<8x16xf32>
    %c0_1 = arith.constant 0 : index
    %c0_2 = arith.constant 0 : index
    %1 = vector.load %arg1[%c0_1, %c0_2] : memref<16x16xf32, #tpu.memory_space<vmem>>, vector<16x16xf32>
    %c0_3 = arith.constant 0 : index
    %c0_4 = arith.constant 0 : index
    %2 = vector.load %arg2[%c0_3, %c0_4] : memref<16x8xf32, #tpu.memory_space<vmem>>, vector<16x8xf32>
    %c0_5 = arith.constant 0 : index
    %c0_6 = arith.constant 0 : index
    %3 = vector.load %arg3[%c0_5, %c0_6] : memref<8x16xf32, #tpu.memory_space<vmem>>, vector<8x16xf32>
    %c0_7 = arith.constant 0 : index
    %c0_8 = arith.constant 0 : index
    %4 = vector.load %arg4[%c0_7, %c0_8] : memref<16x16xf32, #tpu.memory_space<vmem>>, vector<16x16xf32>
    %c0_9 = arith.constant 0 : index
    %c0_10 = arith.constant 0 : index
    %5 = vector.load %arg5[%c0_9, %c0_10] : memref<16x16xf32, #tpu.memory_space<vmem>>, vector<16x16xf32>
    %cst = arith.constant dense<0.000000e+00> : vector<16xf32>
    %6 = vector.multi_reduction <add>, %4, %cst [1] : vector<16x16xf32> to vector<16xf32>
    %7 = vector.shape_cast %6 : vector<16xf32> to vector<16x1xf32>
    %cst_11 = arith.constant 1.000000e+00 : f32
    %8 = vector.broadcast %cst_11 : f32 to vector<16x1xf32>
    %9 = arith.maximumf %7, %8 : vector<16x1xf32>
    %10 = tpu.reciprocal %9 {approx = true} : vector<16x1xf32> -> vector<16x1xf32>
    %cst_12 = arith.constant dense<0.000000e+00> : vector<8xf32>
    %11 = vector.multi_reduction <add>, %3, %cst_12 [1] : vector<8x16xf32> to vector<8xf32>
    %12 = vector.shape_cast %11 : vector<8xf32> to vector<8x1xf32>
    %cst_13 = arith.constant 1.000000e+00 : f32
    %13 = vector.broadcast %cst_13 : f32 to vector<8x1xf32>
    %14 = arith.maximumf %12, %13 : vector<8x1xf32>
    %15 = tpu.reciprocal %14 {approx = true} : vector<8x1xf32> -> vector<8x1xf32>
    %16 = arith.truncf %4 : vector<16x16xf32> to vector<16x16xbf16>
    %17 = arith.truncf %3 : vector<8x16xf32> to vector<8x16xbf16>
    %c0_14 = arith.constant 0 : index
    %c0_15 = arith.constant 0 : index
    %18 = vector.load %arg6[%c0_14, %c0_15] : memref<16x131xf32, #tpu.memory_space<vmem>>, vector<16x131xf32>
    %c0_16 = arith.constant 0 : index
    %c0_17 = arith.constant 0 : index
    %19 = vector.load %arg7[%c0_16, %c0_17] : memref<16x65xf32, #tpu.memory_space<vmem>>, vector<16x65xf32>
    %c0_18 = arith.constant 0 : index
    %c0_19 = arith.constant 0 : index
    %20 = vector.load %arg8[%c0_18, %c0_19] : memref<1x128xf32, #tpu.memory_space<vmem>>, vector<1x128xf32>
    %21 = arith.truncf %1 : vector<16x16xf32> to vector<16x16xbf16>
    %22 = arith.truncf %18 : vector<16x131xf32> to vector<16x131xbf16>
    %cst_20 = arith.constant dense<0.000000e+00> : vector<16x131xf32>
    %23 = tpu.matmul %21, %22, %cst_20 {dimension_numbers = #tpu.dot_dimension_numbers<[1], [0], [0], [1], [0, 0, 1, 1], [], []>} : vector<16x16xbf16>, vector<16x131xbf16>, vector<16x131xf32> -> vector<16x131xf32>
    %24 = arith.truncf %0 : vector<8x16xf32> to vector<8x16xbf16>
    %25 = arith.truncf %19 : vector<16x65xf32> to vector<16x65xbf16>
    %cst_21 = arith.constant dense<0.000000e+00> : vector<8x65xf32>
    %26 = tpu.matmul %24, %25, %cst_21 {dimension_numbers = #tpu.dot_dimension_numbers<[1], [0], [0], [1], [0, 0, 1, 1], [], []>} : vector<8x16xbf16>, vector<16x65xbf16>, vector<8x65xf32> -> vector<8x65xf32>
    %27 = vector.extract_strided_slice %23 {offsets = [0, 0], sizes = [16, 32], strides = [1, 1]} : vector<16x131xf32> to vector<16x32xf32>
    %28 = vector.extract_strided_slice %23 {offsets = [0, 32], sizes = [16, 32], strides = [1, 1]} : vector<16x131xf32> to vector<16x32xf32>
    %29 = vector.extract_strided_slice %23 {offsets = [0, 64], sizes = [16, 32], strides = [1, 1]} : vector<16x131xf32> to vector<16x32xf32>
    %30 = vector.extract_strided_slice %23 {offsets = [0, 96], sizes = [16, 32], strides = [1, 1]} : vector<16x131xf32> to vector<16x32xf32>
    %31 = vector.extract_strided_slice %23 {offsets = [0, 128], sizes = [16, 1], strides = [1, 1]} : vector<16x131xf32> to vector<16x1xf32>
    %32 = vector.extract_strided_slice %23 {offsets = [0, 129], sizes = [16, 1], strides = [1, 1]} : vector<16x131xf32> to vector<16x1xf32>
    %33 = vector.extract_strided_slice %23 {offsets = [0, 130], sizes = [16, 1], strides = [1, 1]} : vector<16x131xf32> to vector<16x1xf32>
    %34 = vector.extract_strided_slice %26 {offsets = [0, 0], sizes = [8, 32], strides = [1, 1]} : vector<8x65xf32> to vector<8x32xf32>
    %35 = vector.extract_strided_slice %26 {offsets = [0, 32], sizes = [8, 32], strides = [1, 1]} : vector<8x65xf32> to vector<8x32xf32>
    %36 = vector.extract_strided_slice %26 {offsets = [0, 64], sizes = [8, 1], strides = [1, 1]} : vector<8x65xf32> to vector<8x1xf32>
    %37 = vector.extract_strided_slice %20 {offsets = [0, 0], sizes = [1, 32], strides = [1, 1]} : vector<1x128xf32> to vector<1x32xf32>
    %38 = vector.extract_strided_slice %20 {offsets = [0, 32], sizes = [1, 32], strides = [1, 1]} : vector<1x128xf32> to vector<1x32xf32>
    %39 = vector.extract_strided_slice %20 {offsets = [0, 64], sizes = [1, 32], strides = [1, 1]} : vector<1x128xf32> to vector<1x32xf32>
    %40 = vector.extract_strided_slice %20 {offsets = [0, 96], sizes = [1, 32], strides = [1, 1]} : vector<1x128xf32> to vector<1x32xf32>
    %cst_22 = arith.constant dense<0.000000e+00> : vector<8xf32>
    %41 = vector.multi_reduction <add>, %36, %cst_22 [1] : vector<8x1xf32> to vector<8xf32>
    %42 = vector.shape_cast %41 : vector<8xf32> to vector<1x8xf32>
    %43 = vector.broadcast %31 : vector<16x1xf32> to vector<16x8xf32>
    %44 = vector.broadcast %42 : vector<1x8xf32> to vector<16x8xf32>
    %45 = arith.addf %43, %44 : vector<16x8xf32>
    %cst_23 = arith.constant 0.000000e+00 : f32
    %46 = vector.broadcast %cst_23 : f32 to vector<16x8xf32>
    %47 = arith.cmpf ogt, %45, %46 : vector<16x8xf32>
    %cst_24 = arith.constant 2.000000e-01 : f32
    %48 = vector.broadcast %cst_24 : f32 to vector<16x8xf32>
    %49 = arith.mulf %48, %45 : vector<16x8xf32>
    %50 = arith.select %47, %45, %49 : vector<16x8xi1>, vector<16x8xf32>
    %cst_25 = arith.constant 0.000000e+00 : f32
    %51 = vector.broadcast %cst_25 : f32 to vector<16x8xf32>
    %52 = arith.cmpf ogt, %2, %51 : vector<16x8xf32>
    %cst_26 = arith.constant -1.000000e+30 : f32
    %53 = vector.broadcast %cst_26 : f32 to vector<16x8xf32>
    %54 = arith.select %52, %50, %53 : vector<16x8xi1>, vector<16x8xf32>
    %cst_27 = arith.constant dense<0xFF800000> : vector<16xf32>
    %55 = vector.multi_reduction <maximumf>, %54, %cst_27 [1] : vector<16x8xf32> to vector<16xf32>
    %56 = vector.shape_cast %55 : vector<16xf32> to vector<16x1xf32>
    %57 = vector.broadcast %56 : vector<16x1xf32> to vector<16x8xf32>
    %58 = arith.subf %54, %57 : vector<16x8xf32>
    %59 = math.exp %58 : vector<16x8xf32>
    %60 = arith.mulf %2, %59 : vector<16x8xf32>
    %cst_28 = arith.constant dense<0.000000e+00> : vector<16xf32>
    %61 = vector.multi_reduction <add>, %60, %cst_28 [1] : vector<16x8xf32> to vector<16xf32>
    %62 = vector.shape_cast %61 : vector<16xf32> to vector<16x1xf32>
    %cst_29 = arith.constant 1.000000e-30 : f32
    %63 = vector.broadcast %cst_29 : f32 to vector<16x1xf32>
    %64 = arith.maximumf %62, %63 : vector<16x1xf32>
    %65 = tpu.reciprocal %64 {approx = true} : vector<16x1xf32> -> vector<16x1xf32>
    %66 = vector.broadcast %65 : vector<16x1xf32> to vector<16x8xf32>
    %67 = arith.mulf %60, %66 : vector<16x8xf32>
    %68 = arith.truncf %67 : vector<16x8xf32> to vector<16x8xbf16>
    %69 = arith.truncf %34 : vector<8x32xf32> to vector<8x32xbf16>
    %cst_30 = arith.constant dense<0.000000e+00> : vector<16x32xf32>
    %70 = tpu.matmul %68, %69, %cst_30 {dimension_numbers = #tpu.dot_dimension_numbers<[1], [0], [0], [1], [0, 0, 1, 1], [], []>} : vector<16x8xbf16>, vector<8x32xbf16>, vector<16x32xf32> -> vector<16x32xf32>
    %71 = vector.broadcast %37 : vector<1x32xf32> to vector<16x32xf32>
    %72 = arith.addf %70, %71 : vector<16x32xf32>
    %cst_31 = arith.constant dense<0.000000e+00> : vector<16xf32>
    %73 = vector.multi_reduction <add>, %32, %cst_31 [1] : vector<16x1xf32> to vector<16xf32>
    %74 = vector.shape_cast %73 : vector<16xf32> to vector<1x16xf32>
    %75 = vector.broadcast %33 : vector<16x1xf32> to vector<16x16xf32>
    %76 = vector.broadcast %74 : vector<1x16xf32> to vector<16x16xf32>
    %77 = arith.addf %75, %76 : vector<16x16xf32>
    %cst_32 = arith.constant 0.000000e+00 : f32
    %78 = vector.broadcast %cst_32 : f32 to vector<16x16xf32>
    %79 = arith.cmpf ogt, %77, %78 : vector<16x16xf32>
    %cst_33 = arith.constant 2.000000e-01 : f32
    %80 = vector.broadcast %cst_33 : f32 to vector<16x16xf32>
    %81 = arith.mulf %80, %77 : vector<16x16xf32>
    %82 = arith.select %79, %77, %81 : vector<16x16xi1>, vector<16x16xf32>
    %cst_34 = arith.constant 0.000000e+00 : f32
    %83 = vector.broadcast %cst_34 : f32 to vector<16x16xf32>
    %84 = arith.cmpf ogt, %5, %83 : vector<16x16xf32>
    %cst_35 = arith.constant -1.000000e+30 : f32
    %85 = vector.broadcast %cst_35 : f32 to vector<16x16xf32>
    %86 = arith.select %84, %82, %85 : vector<16x16xi1>, vector<16x16xf32>
    %cst_36 = arith.constant dense<0xFF800000> : vector<16xf32>
    %87 = vector.multi_reduction <maximumf>, %86, %cst_36 [1] : vector<16x16xf32> to vector<16xf32>
    %88 = vector.shape_cast %87 : vector<16xf32> to vector<16x1xf32>
    %89 = vector.broadcast %88 : vector<16x1xf32> to vector<16x16xf32>
    %90 = arith.subf %86, %89 : vector<16x16xf32>
    %91 = math.exp %90 : vector<16x16xf32>
    %92 = arith.mulf %5, %91 : vector<16x16xf32>
    %cst_37 = arith.constant dense<0.000000e+00> : vector<16xf32>
    %93 = vector.multi_reduction <add>, %92, %cst_37 [1] : vector<16x16xf32> to vector<16xf32>
    %94 = vector.shape_cast %93 : vector<16xf32> to vector<16x1xf32>
    %cst_38 = arith.constant 1.000000e-30 : f32
    %95 = vector.broadcast %cst_38 : f32 to vector<16x1xf32>
    %96 = arith.maximumf %94, %95 : vector<16x1xf32>
    %97 = tpu.reciprocal %96 {approx = true} : vector<16x1xf32> -> vector<16x1xf32>
    %98 = vector.broadcast %97 : vector<16x1xf32> to vector<16x16xf32>
    %99 = arith.mulf %92, %98 : vector<16x16xf32>
    %100 = arith.truncf %99 : vector<16x16xf32> to vector<16x16xbf16>
    %101 = arith.truncf %27 : vector<16x32xf32> to vector<16x32xbf16>
    %cst_39 = arith.constant dense<0.000000e+00> : vector<16x32xf32>
    %102 = tpu.matmul %100, %101, %cst_39 {dimension_numbers = #tpu.dot_dimension_numbers<[1], [0], [0], [1], [0, 0, 1, 1], [], []>} : vector<16x16xbf16>, vector<16x32xbf16>, vector<16x32xf32> -> vector<16x32xf32>
    %103 = vector.broadcast %38 : vector<1x32xf32> to vector<16x32xf32>
    %104 = arith.addf %102, %103 : vector<16x32xf32>
    %105 = arith.truncf %28 : vector<16x32xf32> to vector<16x32xbf16>
    %cst_40 = arith.constant dense<0.000000e+00> : vector<16x32xf32>
    %106 = tpu.matmul %16, %105, %cst_40 {dimension_numbers = #tpu.dot_dimension_numbers<[1], [0], [0], [1], [0, 0, 1, 1], [], []>} : vector<16x16xbf16>, vector<16x32xbf16>, vector<16x32xf32> -> vector<16x32xf32>
    %107 = vector.broadcast %10 : vector<16x1xf32> to vector<16x32xf32>
    %108 = arith.mulf %106, %107 : vector<16x32xf32>
    %109 = vector.broadcast %39 : vector<1x32xf32> to vector<16x32xf32>
    %110 = arith.addf %108, %109 : vector<16x32xf32>
    %111 = arith.addf %110, %29 : vector<16x32xf32>
    %112 = arith.truncf %30 : vector<16x32xf32> to vector<16x32xbf16>
    %cst_41 = arith.constant dense<0.000000e+00> : vector<8x32xf32>
    %113 = tpu.matmul %17, %112, %cst_41 {dimension_numbers = #tpu.dot_dimension_numbers<[1], [0], [0], [1], [0, 0, 1, 1], [], []>} : vector<8x16xbf16>, vector<16x32xbf16>, vector<8x32xf32> -> vector<8x32xf32>
    %114 = vector.broadcast %15 : vector<8x1xf32> to vector<8x32xf32>
    %115 = arith.mulf %113, %114 : vector<8x32xf32>
    %116 = vector.broadcast %40 : vector<1x32xf32> to vector<8x32xf32>
    %117 = arith.addf %115, %116 : vector<8x32xf32>
    %118 = arith.addf %117, %35 : vector<8x32xf32>
    %119 = arith.addf %72, %104 : vector<16x32xf32>
    %120 = arith.addf %119, %111 : vector<16x32xf32>
    %cst_42 = arith.constant 0.000000e+00 : f32
    %121 = vector.broadcast %cst_42 : f32 to vector<16x32xf32>
    %122 = arith.maximumf %120, %121 : vector<16x32xf32>
    %cst_43 = arith.constant 0.000000e+00 : f32
    %123 = vector.broadcast %cst_43 : f32 to vector<8x32xf32>
    %124 = arith.maximumf %118, %123 : vector<8x32xf32>
    %c0_44 = arith.constant 0 : index
    %c0_45 = arith.constant 0 : index
    %125 = vector.load %arg9[%c0_44, %c0_45] : memref<32x131xf32, #tpu.memory_space<vmem>>, vector<32x131xf32>
    %c0_46 = arith.constant 0 : index
    %c0_47 = arith.constant 0 : index
    %126 = vector.load %arg10[%c0_46, %c0_47] : memref<32x65xf32, #tpu.memory_space<vmem>>, vector<32x65xf32>
    %c0_48 = arith.constant 0 : index
    %c0_49 = arith.constant 0 : index
    %127 = vector.load %arg11[%c0_48, %c0_49] : memref<1x128xf32, #tpu.memory_space<vmem>>, vector<1x128xf32>
    %128 = arith.truncf %122 : vector<16x32xf32> to vector<16x32xbf16>
    %129 = arith.truncf %125 : vector<32x131xf32> to vector<32x131xbf16>
    %cst_50 = arith.constant dense<0.000000e+00> : vector<16x131xf32>
    %130 = tpu.matmul %128, %129, %cst_50 {dimension_numbers = #tpu.dot_dimension_numbers<[1], [0], [0], [1], [0, 0, 1, 1], [], []>} : vector<16x32xbf16>, vector<32x131xbf16>, vector<16x131xf32> -> vector<16x131xf32>
    %131 = arith.truncf %124 : vector<8x32xf32> to vector<8x32xbf16>
    %132 = arith.truncf %126 : vector<32x65xf32> to vector<32x65xbf16>
    %cst_51 = arith.constant dense<0.000000e+00> : vector<8x65xf32>
    %133 = tpu.matmul %131, %132, %cst_51 {dimension_numbers = #tpu.dot_dimension_numbers<[1], [0], [0], [1], [0, 0, 1, 1], [], []>} : vector<8x32xbf16>, vector<32x65xbf16>, vector<8x65xf32> -> vector<8x65xf32>
    %134 = vector.extract_strided_slice %130 {offsets = [0, 0], sizes = [16, 32], strides = [1, 1]} : vector<16x131xf32> to vector<16x32xf32>
    %135 = vector.extract_strided_slice %130 {offsets = [0, 32], sizes = [16, 32], strides = [1, 1]} : vector<16x131xf32> to vector<16x32xf32>
    %136 = vector.extract_strided_slice %130 {offsets = [0, 64], sizes = [16, 32], strides = [1, 1]} : vector<16x131xf32> to vector<16x32xf32>
    %137 = vector.extract_strided_slice %130 {offsets = [0, 128], sizes = [16, 1], strides = [1, 1]} : vector<16x131xf32> to vector<16x1xf32>
    %138 = vector.extract_strided_slice %130 {offsets = [0, 129], sizes = [16, 1], strides = [1, 1]} : vector<16x131xf32> to vector<16x1xf32>
    %139 = vector.extract_strided_slice %130 {offsets = [0, 130], sizes = [16, 1], strides = [1, 1]} : vector<16x131xf32> to vector<16x1xf32>
    %140 = vector.extract_strided_slice %133 {offsets = [0, 0], sizes = [8, 32], strides = [1, 1]} : vector<8x65xf32> to vector<8x32xf32>
    %141 = vector.extract_strided_slice %133 {offsets = [0, 64], sizes = [8, 1], strides = [1, 1]} : vector<8x65xf32> to vector<8x1xf32>
    %142 = vector.extract_strided_slice %127 {offsets = [0, 0], sizes = [1, 32], strides = [1, 1]} : vector<1x128xf32> to vector<1x32xf32>
    %143 = vector.extract_strided_slice %127 {offsets = [0, 32], sizes = [1, 32], strides = [1, 1]} : vector<1x128xf32> to vector<1x32xf32>
    %144 = vector.extract_strided_slice %127 {offsets = [0, 64], sizes = [1, 32], strides = [1, 1]} : vector<1x128xf32> to vector<1x32xf32>
    %cst_52 = arith.constant dense<0.000000e+00> : vector<8xf32>
    %145 = vector.multi_reduction <add>, %141, %cst_52 [1] : vector<8x1xf32> to vector<8xf32>
    %146 = vector.shape_cast %145 : vector<8xf32> to vector<1x8xf32>
    %147 = vector.broadcast %137 : vector<16x1xf32> to vector<16x8xf32>
    %148 = vector.broadcast %146 : vector<1x8xf32> to vector<16x8xf32>
    %149 = arith.addf %147, %148 : vector<16x8xf32>
    %cst_53 = arith.constant 0.000000e+00 : f32
    %150 = vector.broadcast %cst_53 : f32 to vector<16x8xf32>
    %151 = arith.cmpf ogt, %149, %150 : vector<16x8xf32>
    %cst_54 = arith.constant 2.000000e-01 : f32
    %152 = vector.broadcast %cst_54 : f32 to vector<16x8xf32>
    %153 = arith.mulf %152, %149 : vector<16x8xf32>
    %154 = arith.select %151, %149, %153 : vector<16x8xi1>, vector<16x8xf32>
    %cst_55 = arith.constant 0.000000e+00 : f32
    %155 = vector.broadcast %cst_55 : f32 to vector<16x8xf32>
    %156 = arith.cmpf ogt, %2, %155 : vector<16x8xf32>
    %cst_56 = arith.constant -1.000000e+30 : f32
    %157 = vector.broadcast %cst_56 : f32 to vector<16x8xf32>
    %158 = arith.select %156, %154, %157 : vector<16x8xi1>, vector<16x8xf32>
    %cst_57 = arith.constant dense<0xFF800000> : vector<16xf32>
    %159 = vector.multi_reduction <maximumf>, %158, %cst_57 [1] : vector<16x8xf32> to vector<16xf32>
    %160 = vector.shape_cast %159 : vector<16xf32> to vector<16x1xf32>
    %161 = vector.broadcast %160 : vector<16x1xf32> to vector<16x8xf32>
    %162 = arith.subf %158, %161 : vector<16x8xf32>
    %163 = math.exp %162 : vector<16x8xf32>
    %164 = arith.mulf %2, %163 : vector<16x8xf32>
    %cst_58 = arith.constant dense<0.000000e+00> : vector<16xf32>
    %165 = vector.multi_reduction <add>, %164, %cst_58 [1] : vector<16x8xf32> to vector<16xf32>
    %166 = vector.shape_cast %165 : vector<16xf32> to vector<16x1xf32>
    %cst_59 = arith.constant 1.000000e-30 : f32
    %167 = vector.broadcast %cst_59 : f32 to vector<16x1xf32>
    %168 = arith.maximumf %166, %167 : vector<16x1xf32>
    %169 = tpu.reciprocal %168 {approx = true} : vector<16x1xf32> -> vector<16x1xf32>
    %170 = vector.broadcast %169 : vector<16x1xf32> to vector<16x8xf32>
    %171 = arith.mulf %164, %170 : vector<16x8xf32>
    %172 = arith.truncf %171 : vector<16x8xf32> to vector<16x8xbf16>
    %173 = arith.truncf %140 : vector<8x32xf32> to vector<8x32xbf16>
    %cst_60 = arith.constant dense<0.000000e+00> : vector<16x32xf32>
    %174 = tpu.matmul %172, %173, %cst_60 {dimension_numbers = #tpu.dot_dimension_numbers<[1], [0], [0], [1], [0, 0, 1, 1], [], []>} : vector<16x8xbf16>, vector<8x32xbf16>, vector<16x32xf32> -> vector<16x32xf32>
    %175 = vector.broadcast %142 : vector<1x32xf32> to vector<16x32xf32>
    %176 = arith.addf %174, %175 : vector<16x32xf32>
    %cst_61 = arith.constant dense<0.000000e+00> : vector<16xf32>
    %177 = vector.multi_reduction <add>, %138, %cst_61 [1] : vector<16x1xf32> to vector<16xf32>
    %178 = vector.shape_cast %177 : vector<16xf32> to vector<1x16xf32>
    %179 = vector.broadcast %139 : vector<16x1xf32> to vector<16x16xf32>
    %180 = vector.broadcast %178 : vector<1x16xf32> to vector<16x16xf32>
    %181 = arith.addf %179, %180 : vector<16x16xf32>
    %cst_62 = arith.constant 0.000000e+00 : f32
    %182 = vector.broadcast %cst_62 : f32 to vector<16x16xf32>
    %183 = arith.cmpf ogt, %181, %182 : vector<16x16xf32>
    %cst_63 = arith.constant 2.000000e-01 : f32
    %184 = vector.broadcast %cst_63 : f32 to vector<16x16xf32>
    %185 = arith.mulf %184, %181 : vector<16x16xf32>
    %186 = arith.select %183, %181, %185 : vector<16x16xi1>, vector<16x16xf32>
    %cst_64 = arith.constant 0.000000e+00 : f32
    %187 = vector.broadcast %cst_64 : f32 to vector<16x16xf32>
    %188 = arith.cmpf ogt, %5, %187 : vector<16x16xf32>
    %cst_65 = arith.constant -1.000000e+30 : f32
    %189 = vector.broadcast %cst_65 : f32 to vector<16x16xf32>
    %190 = arith.select %188, %186, %189 : vector<16x16xi1>, vector<16x16xf32>
    %cst_66 = arith.constant dense<0xFF800000> : vector<16xf32>
    %191 = vector.multi_reduction <maximumf>, %190, %cst_66 [1] : vector<16x16xf32> to vector<16xf32>
    %192 = vector.shape_cast %191 : vector<16xf32> to vector<16x1xf32>
    %193 = vector.broadcast %192 : vector<16x1xf32> to vector<16x16xf32>
    %194 = arith.subf %190, %193 : vector<16x16xf32>
    %195 = math.exp %194 : vector<16x16xf32>
    %196 = arith.mulf %5, %195 : vector<16x16xf32>
    %cst_67 = arith.constant dense<0.000000e+00> : vector<16xf32>
    %197 = vector.multi_reduction <add>, %196, %cst_67 [1] : vector<16x16xf32> to vector<16xf32>
    %198 = vector.shape_cast %197 : vector<16xf32> to vector<16x1xf32>
    %cst_68 = arith.constant 1.000000e-30 : f32
    %199 = vector.broadcast %cst_68 : f32 to vector<16x1xf32>
    %200 = arith.maximumf %198, %199 : vector<16x1xf32>
    %201 = tpu.reciprocal %200 {approx = true} : vector<16x1xf32> -> vector<16x1xf32>
    %202 = vector.broadcast %201 : vector<16x1xf32> to vector<16x16xf32>
    %203 = arith.mulf %196, %202 : vector<16x16xf32>
    %204 = arith.truncf %203 : vector<16x16xf32> to vector<16x16xbf16>
    %205 = arith.truncf %134 : vector<16x32xf32> to vector<16x32xbf16>
    %cst_69 = arith.constant dense<0.000000e+00> : vector<16x32xf32>
    %206 = tpu.matmul %204, %205, %cst_69 {dimension_numbers = #tpu.dot_dimension_numbers<[1], [0], [0], [1], [0, 0, 1, 1], [], []>} : vector<16x16xbf16>, vector<16x32xbf16>, vector<16x32xf32> -> vector<16x32xf32>
    %207 = vector.broadcast %143 : vector<1x32xf32> to vector<16x32xf32>
    %208 = arith.addf %206, %207 : vector<16x32xf32>
    %209 = arith.truncf %135 : vector<16x32xf32> to vector<16x32xbf16>
    %cst_70 = arith.constant dense<0.000000e+00> : vector<16x32xf32>
    %210 = tpu.matmul %16, %209, %cst_70 {dimension_numbers = #tpu.dot_dimension_numbers<[1], [0], [0], [1], [0, 0, 1, 1], [], []>} : vector<16x16xbf16>, vector<16x32xbf16>, vector<16x32xf32> -> vector<16x32xf32>
    %211 = vector.broadcast %10 : vector<16x1xf32> to vector<16x32xf32>
    %212 = arith.mulf %210, %211 : vector<16x32xf32>
    %213 = vector.broadcast %144 : vector<1x32xf32> to vector<16x32xf32>
    %214 = arith.addf %212, %213 : vector<16x32xf32>
    %215 = arith.addf %214, %136 : vector<16x32xf32>
    %216 = arith.addf %176, %208 : vector<16x32xf32>
    %217 = arith.addf %216, %215 : vector<16x32xf32>
    %cst_71 = arith.constant 0.000000e+00 : f32
    %218 = vector.broadcast %cst_71 : f32 to vector<16x32xf32>
    %219 = arith.maximumf %217, %218 : vector<16x32xf32>
    %220 = arith.truncf %219 : vector<16x32xf32> to vector<16x32xbf16>
    %c0_72 = arith.constant 0 : index
    %c0_73 = arith.constant 0 : index
    %221 = vector.load %arg12[%c0_72, %c0_73] : memref<32x128xf32, #tpu.memory_space<vmem>>, vector<32x128xf32>
    %222 = arith.truncf %221 : vector<32x128xf32> to vector<32x128xbf16>
    %cst_74 = arith.constant dense<0.000000e+00> : vector<16x128xf32>
    %223 = tpu.matmul %220, %222, %cst_74 {dimension_numbers = #tpu.dot_dimension_numbers<[1], [0], [0], [1], [0, 0, 1, 1], [], []>} : vector<16x32xbf16>, vector<32x128xbf16>, vector<16x128xf32> -> vector<16x128xf32>
    %c0_75 = arith.constant 0 : index
    %c0_76 = arith.constant 0 : index
    %224 = vector.load %arg13[%c0_75, %c0_76] : memref<1x128xf32, #tpu.memory_space<vmem>>, vector<1x128xf32>
    %225 = vector.broadcast %224 : vector<1x128xf32> to vector<16x128xf32>
    %226 = arith.addf %223, %225 : vector<16x128xf32>
    %c0_77 = arith.constant 0 : index
    %c0_78 = arith.constant 0 : index
    %227 = vector.load %arg14[%c0_77, %c0_78] : memref<16x128xf32, #tpu.memory_space<vmem>>, vector<16x128xf32>
    tpu.vector_store %arg14[%c0_77, %c0_78], %226 {strides = array<i32>} : memref<16x128xf32, #tpu.memory_space<vmem>>, vector<16x128xf32>,
    return
  }
}

</mosaic_0001>

<llo_original>
// kernel: hetero_gnn_forward.1
$region0: #{hetero_gnn_forward.1}
  #allocation0 [shape = 'u32[]', space=smem, size = 0x4, offset = 0x4, fixed_abs, tag = 'smem constant byte address 0x4 - core index']
  #allocation1 [shape = 'u32[144,128]{1,0:T(1,128)}', space=vmem, size = 0x12000, scoped, tag = 'internal scratch']
  %s0 = inlined_call_operand.vmem [shape: f32[8,16], index: 0, kind: input, shape index: {}]
  %s1 = inlined_call_operand.vmem [shape: f32[16,16], index: 1, kind: input, shape index: {}]
  %s2 = inlined_call_operand.vmem [shape: f32[16,8], index: 2, kind: input, shape index: {}]
  %s3 = inlined_call_operand.vmem [shape: f32[8,16], index: 3, kind: input, shape index: {}]
  %s4 = inlined_call_operand.vmem [shape: f32[16,16], index: 4, kind: input, shape index: {}]
  %s5 = inlined_call_operand.vmem [shape: f32[16,16], index: 5, kind: input, shape index: {}]
  %s6 = inlined_call_operand.vmem [shape: f32[16,131], index: 6, kind: input, shape index: {}]
  %s7 = inlined_call_operand.vmem [shape: f32[16,65], index: 7, kind: input, shape index: {}]
  %s8 = inlined_call_operand.vmem [shape: f32[1,128], index: 8, kind: input, shape index: {}]
  %s9 = inlined_call_operand.vmem [shape: f32[32,131], index: 9, kind: input, shape index: {}]
  %s10 = inlined_call_operand.vmem [shape: f32[32,65], index: 10, kind: input, shape index: {}]
  %s11 = inlined_call_operand.vmem [shape: f32[1,128], index: 11, kind: input, shape index: {}]
  %s12 = inlined_call_operand.vmem [shape: f32[32,128], index: 12, kind: input, shape index: {}]
  %s13 = inlined_call_operand.vmem [shape: f32[1,128], index: 13, kind: input, shape index: {}]
  %s14 = inlined_call_operand.vmem [shape: f32[16,128], index: 14, kind: output, shape index: {}]
  %s15 = sld [smem:[#allocation0]]
  $region66: #{hetero_gnn_forward.1} parent=0
    _
  %s17 = ssub.s32 1, %s15
  %s18 = scalar_select 0, %s17, %s15
  // Predicated region
  $region2: #{hetero_gnn_forward.1} parent=0 // pred_check
    _
  $region3: #{hetero_gnn_forward.1} parent=0 // pred_check_branch
    %20 = sbr.rel (0) target = $region5
  $region4: #{hetero_gnn_forward.1} parent=0 // pred_region
    _
  $region5: #{hetero_gnn_forward.1} parent=0 // pred_fallthru
    _
  // Predicated region
  $region6: #{hetero_gnn_forward.1} parent=0 // pred_check
    _
  $region7: #{hetero_gnn_forward.1} parent=0 // pred_check_branch
    %22 = sbr.rel (0) target = $region9
  $region8: #{hetero_gnn_forward.1} parent=0 // pred_region
    _
  $region9: #{hetero_gnn_forward.1} parent=0 // pred_fallthru
    _
  // Predicated region
  $region10: #{hetero_gnn_forward.1} parent=0 // pred_check
    _
  $region11: #{hetero_gnn_forward.1} parent=0 // pred_check_branch
    %24 = sbr.rel (0) target = $region13
  $region12: #{hetero_gnn_forward.1} parent=0 // pred_region
    _
  $region13: #{hetero_gnn_forward.1} parent=0 // pred_fallthru
    _
  // Predicated region
  $region14: #{hetero_gnn_forward.1} parent=0 // pred_check
    _
  $region15: #{hetero_gnn_forward.1} parent=0 // pred_check_branch
    %26 = sbr.rel (0) target = $region17
  $region16: #{hetero_gnn_forward.1} parent=0 // pred_region
    _
  $region17: #{hetero_gnn_forward.1} parent=0 // pred_fallthru
    _
  // Predicated region
  $region18: #{hetero_gnn_forward.1} parent=0 // pred_check
    _
  $region19: #{hetero_gnn_forward.1} parent=0 // pred_check_branch
    %28 = sbr.rel (0) target = $region21
  $region20: #{hetero_gnn_forward.1} parent=0 // pred_region
    _
  $region21: #{hetero_gnn_forward.1} parent=0 // pred_fallthru
    _
  // Predicated region
  $region22: #{hetero_gnn_forward.1} parent=0 // pred_check
    _
  $region23: #{hetero_gnn_forward.1} parent=0 // pred_check_branch
    %30 = sbr.rel (0) target = $region25
  $region24: #{hetero_gnn_forward.1} parent=0 // pred_region
    _
  $region25: #{hetero_gnn_forward.1} parent=0 // pred_fallthru
    _
  // Predicated region
  $region26: #{hetero_gnn_forward.1} parent=0 // pred_check
    _
  $region27: #{hetero_gnn_forward.1} parent=0 // pred_check_branch
    %32 = sbr.rel (0) target = $region29
  $region28: #{hetero_gnn_forward.1} parent=0 // pred_region
    _
  $region29: #{hetero_gnn_forward.1} parent=0 // pred_fallthru
    _
  // Predicated region
  $region30: #{hetero_gnn_forward.1} parent=0 // pred_check
    _
  $region31: #{hetero_gnn_forward.1} parent=0 // pred_check_branch
    %34 = sbr.rel (0) target = $region33
  $region32: #{hetero_gnn_forward.1} parent=0 // pred_region
    _
  $region33: #{hetero_gnn_forward.1} parent=0 // pred_fallthru
    _
  // Predicated region
  $region34: #{hetero_gnn_forward.1} parent=0 // pred_check
    _
  $region35: #{hetero_gnn_forward.1} parent=0 // pred_check_branch
    %36 = sbr.rel (0) target = $region37
  $region36: #{hetero_gnn_forward.1} parent=0 // pred_region
    _
  $region37: #{hetero_gnn_forward.1} parent=0 // pred_fallthru
    _
  // Predicated region
  $region38: #{hetero_gnn_forward.1} parent=0 // pred_check
    _
  $region39: #{hetero_gnn_forward.1} parent=0 // pred_check_branch
    %38 = sbr.rel (0) target = $region41
  $region40: #{hetero_gnn_forward.1} parent=0 // pred_region
    _
  $region41: #{hetero_gnn_forward.1} parent=0 // pred_fallthru
    _
  // Predicated region
  $region42: #{hetero_gnn_forward.1} parent=0 // pred_check
    _
  $region43: #{hetero_gnn_forward.1} parent=0 // pred_check_branch
    %40 = sbr.rel (0) target = $region45
  $region44: #{hetero_gnn_forward.1} parent=0 // pred_region
    _
  $region45: #{hetero_gnn_forward.1} parent=0 // pred_fallthru
    _
  // Predicated region
  $region46: #{hetero_gnn_forward.1} parent=0 // pred_check
    _
  $region47: #{hetero_gnn_forward.1} parent=0 // pred_check_branch
    %42 = sbr.rel (0) target = $region49
  $region48: #{hetero_gnn_forward.1} parent=0 // pred_region
    _
  $region49: #{hetero_gnn_forward.1} parent=0 // pred_fallthru
    _
  // Predicated region
  $region50: #{hetero_gnn_forward.1} parent=0 // pred_check
    _
  $region51: #{hetero_gnn_forward.1} parent=0 // pred_check_branch
    %44 = sbr.rel (0) target = $region53
  $region52: #{hetero_gnn_forward.1} parent=0 // pred_region
    _
  $region53: #{hetero_gnn_forward.1} parent=0 // pred_fallthru
    _
  // Predicated region
  $region54: #{hetero_gnn_forward.1} parent=0 // pred_check
    _
  $region55: #{hetero_gnn_forward.1} parent=0 // pred_check_branch
    %46 = sbr.rel (0) target = $region57
  $region56: #{hetero_gnn_forward.1} parent=0 // pred_region
    _
  $region57: #{hetero_gnn_forward.1} parent=0 // pred_fallthru
    _
  %v48 = vld [vmem:[%s0] sm:$0xff]
  %v49 = vld [vmem:[%s1] sm:$0xff]
  %v50 = vld [vmem:[%s1 + $0x8] sm:$0xff]
  %v51 = vld [vmem:[%s2] sm:$0xff]
  %v52 = vld [vmem:[%s2 + $0x8] sm:$0xff]
  %v53 = vld [vmem:[%s3] sm:$0xff]
  %v54 = vld [vmem:[%s4] sm:$0xff]
  %v55 = vld [vmem:[%s4 + $0x8] sm:$0xff]
  %v56 = vld [vmem:[%s5] sm:$0xff]
  %v57 = vld [vmem:[%s5 + $0x8] sm:$0xff]
  %vm58 = vcmask 130048
  %v59 = vsel %vm58, %v54, 0.0
  %60 = vadd.xlane.f32.xlu0 %v59
  %v61 = vpop.xlane.xlu0 %60
  %v62 = vsel %vm58, %v55, 0.0
  %63 = vadd.xlane.f32.xlu0 %v62
  %v64 = vpop.xlane.xlu0 %63
  %v65 = vmax.f32 %v61, 1.0
  %v66 = vmax.f32 %v64, 1.0
  %v67 = vrcp.pop %v65
  %v68 = vrcp.pop %v66
  %v69 = vsel %vm58, %v53, 0.0
  %70 = vadd.xlane.f32.xlu0 %v69
  %v71 = vpop.xlane.xlu0 %70
  %v72 = vmax.f32 %v71, 1.0
  %v73 = vrcp.pop %v72
  %v74 = vpack.c.bf16 %v55, %v54
  %v75 = vpack.c.bf16 %v53, %v53
  %v76 = vld [vmem:[%s6] sm:$0xff]
  %v77 = vld [vmem:[%s6 + $0x8] sm:$0xff]
  %v78 = vld [vmem:[%s6 + $0x10] sm:$0xff]
  %v79 = vld [vmem:[%s6 + $0x18] sm:$0xff]
  %v80 = vld [vmem:[%s7] sm:$0xff]
  %v81 = vld [vmem:[%s7 + $0x8] sm:$0xff]
  %v82 = vld [vmem:[%s8] sm:$0x1]
  %v83 = vpack.c.bf16 %v50, %v49
  %v84 = vpack.c.bf16 %v78, %v76
  %v85 = vpack.c.bf16 %v79, %v77
  %v87 = vsel %vm58, %v83, 0
  %89 = vmatprep.subr.bf16.mxu0 0
  %90 = vmatpush1.bf16.msra.mxu0 0
  %91 = vmatprep.subr.bf16.mxu0 0
  %92 = vmatpush1.bf16.msra.mxu0 0
  %93 = vmatprep.subr.bf16.mxu0 0
  %94 = vmatpush1.bf16.msra.mxu0 0
  %95 = vmatprep.subr.bf16.mxu0 0
  %96 = vmatpush1.bf16.msra.mxu0 0
  %97 = vmatprep.subr.bf16.mxu0 0
  %98 = vmatpush1.bf16.msra.mxu0 0
  %99 = vmatprep.subr.bf16.mxu0 0
  %100 = vmatpush1.bf16.msra.mxu0 0
  %101 = vmatprep.subr.bf16.mxu0 0
  %102 = vmatpush1.bf16.msra.mxu0 0
  %103 = vmatprep.subr.bf16.mxu0 %v85
  %104 = vmatpush1.bf16.msra.mxu0 %v84
  %105 = vmatprep.subr.bf16.mxu0 0
  %106 = vmatpush2.bf16.msra.mxu0 0
  %107 = vmatprep.subr.bf16.mxu0 0
  %108 = vmatpush2.bf16.msra.mxu0 0
  %109 = vmatprep.subr.bf16.mxu0 0
  %110 = vmatpush2.bf16.msra.mxu0 0
  %111 = vmatprep.subr.bf16.mxu0 0
  %112 = vmatpush2.bf16.msra.mxu0 0
  %113 = vmatprep.subr.bf16.mxu0 0
  %114 = vmatpush2.bf16.msra.mxu0 0
  %115 = vmatprep.subr.bf16.mxu0 0
  %116 = vmatpush2.bf16.msra.mxu0 0
  %117 = vmatprep.subr.bf16.mxu0 0
  %118 = vmatpush2.bf16.msra.mxu0 0
  %119 = vmatprep.subr.bf16.mxu0 0
  %120 = vmatpush2.bf16.msra.mxu0 0
  %121 = vmatprep.mubr.bf16.mxu0 0
  %122 = vmatmul.mubr.bf16.gmra.mxu0 %v87
  %v123 = vpop.f32.mrf.mxu0
  %v124 = vadd.f32 0.0, %v123
  %v125 = vpop.f32.mrf.mxu0
  %v126 = vadd.f32 0.0, %v125
  %v127 = vpop.f32.mrf.mxu0
  %v128 = vadd.f32 0.0, %v127
  %v129 = vpop.f32.mrf.mxu0
  %v130 = vadd.f32 0.0, %v129
  %131 = vdwg.mxu0
  %v132 = vpack.c.bf16 %v48, %v48
  %v133 = vpack.c.bf16 %v81, %v80
  %v135 = vsel %vm58, %v132, 0
  %137 = vmatprep.subr.bf16.mxu0 0
  %138 = vmatpush1.bf16.msra.mxu0 0
  %139 = vmatprep.subr.bf16.mxu0 0
  %140 = vmatpush1.bf16.msra.mxu0 0
  %141 = vmatprep.subr.bf16.mxu0 0
  %142 = vmatpush1.bf16.msra.mxu0 0
  %143 = vmatprep.subr.bf16.mxu0 0
  %144 = vmatpush1.bf16.msra.mxu0 0
  %145 = vmatprep.subr.bf16.mxu0 0
  %146 = vmatpush1.bf16.msra.mxu0 0
  %147 = vmatprep.subr.bf16.mxu0 0
  %148 = vmatpush1.bf16.msra.mxu0 0
  %149 = vmatprep.subr.bf16.mxu0 0
  %150 = vmatpush1.bf16.msra.mxu0 0
  %151 = vmatprep.subr.bf16.mxu0 0
  %152 = vmatpush1.bf16.msra.mxu0 %v133
  %153 = vmatprep.subr.bf16.mxu0 0
  %154 = vmatpush2.bf16.msra.mxu0 0
  %155 = vmatprep.subr.bf16.mxu0 0
  %156 = vmatpush2.bf16.msra.mxu0 0
  %157 = vmatprep.subr.bf16.mxu0 0
  %158 = vmatpush2.bf16.msra.mxu0 0
  %159 = vmatprep.subr.bf16.mxu0 0
  %160 = vmatpush2.bf16.msra.mxu0 0
  %161 = vmatprep.subr.bf16.mxu0 0
  %162 = vmatpush2.bf16.msra.mxu0 0
  %163 = vmatprep.subr.bf16.mxu0 0
  %164 = vmatpush2.bf16.msra.mxu0 0
  %165 = vmatprep.subr.bf16.mxu0 0
  %166 = vmatpush2.bf16.msra.mxu0 0
  %167 = vmatprep.subr.bf16.mxu0 0
  %168 = vmatpush2.bf16.msra.mxu0 0
  %169 = vmatprep.mubr.bf16.mxu0 0
  %170 = vmatmul.mubr.bf16.gmra.mxu0 %v135
  %v171 = vpop.f32.mrf.mxu0
  %v172 = vadd.f32 0.0, %v171
  %v173 = vpop.f32.mrf.mxu0
  %v174 = vpop.f32.mrf.mxu0
  %v175 = vpop.f32.mrf.mxu0
  %176 = vdwg.mxu0
  %v177 = vadd.f32 %v172, 0.0
  %179 = vset.pattern.permute.xlu0 0
  %180 = vperm.xlu0 %179, %v126
  %v181 = vpop.permute.xlu0 %180
  %184 = vset.pattern.permute.xlu0 0
  %185 = vperm.xlu0 %184, %v130
  %v186 = vpop.permute.xlu0 %185
  %189 = vset.pattern.permute.xlu0 64
  %190 = vperm.xlu0 %189, %v177
  %v191 = vpop.permute.xlu0 %190
  %v192 = vlaneseq
  %v193 = vand.u32 %v192, 127
  %v194 = vlaneseq
  %v195 = vshrl.u32 %v194, 7
  %v196 = vsub.s32 %v193, %v195
  %v197 = vrot.slane %v191, %v196
  %vm198 = vcmask 1042434
  %v199 = vsel %vm198, %v197, %v197
  %vm200 = vcmask 1043459
  %v201 = vsel %vm200, %v197, %v199
  %vm202 = vcmask 1044484
  %v203 = vsel %vm202, %v197, %v201
  %vm204 = vcmask 1045509
  %v205 = vsel %vm204, %v197, %v203
  %vm206 = vcmask 1046534
  %v207 = vsel %vm206, %v197, %v205
  %vm208 = vcmask 1047559
  %v209 = vsel %vm208, %v197, %v207
  %v211 = vadd.f32 %v181, %v209
  %v212 = vadd.f32 %v186, %v209
  %vm213 = vcmp.gt.f32.partialorder %v211, 0.0
  %vm214 = vcmp.gt.f32.partialorder %v212, 0.0
  %v215 = vmul.f32 %v211, 0.2
  %v216 = vmul.f32 %v212, 0.2
  %v217 = vsel %vm213, %v211, %v215
  %v218 = vsel %vm214, %v212, %v216
  %vm219 = vcmp.gt.f32.partialorder %v51, 0.0
  %vm220 = vcmp.gt.f32.partialorder %v52, 0.0
  %v221 = vsel %vm219, %v217, -1e+30
  %v222 = vsel %vm220, %v218, -1e+30
  %vm223 = vcmask 64512
  %v224 = vsel %vm223, %v221, -inf
  %225 = vmax.xlane.f32.xlu0 %v224
  %v226 = vpop.xlane.xlu0 %225
  %v227 = vsel %vm223, %v222, -inf
  %228 = vmax.xlane.f32.xlu0 %v227
  %v229 = vpop.xlane.xlu0 %228
  %v230 = vsub.f32 %v221, %v226
  %v231 = vsub.f32 %v222, %v229
  %v232 = vmul.f32 %v230, 1.442695
  %v233 = vpow.pop %v232
  %v234 = vmul.f32 %v231, 1.442695
  %v235 = vpow.pop %v234
  %v236 = vmul.f32 %v51, %v233
  %v237 = vmul.f32 %v52, %v235
  %v238 = vsel %vm223, %v236, 0.0
  %239 = vadd.xlane.f32.xlu0 %v238
  %v240 = vpop.xlane.xlu0 %239
  %v241 = vsel %vm223, %v237, 0.0
  %242 = vadd.xlane.f32.xlu0 %v241
  %v243 = vpop.xlane.xlu0 %242
  %v244 = vmax.f32 %v240, 1e-30
  %v245 = vmax.f32 %v243, 1e-30
  %v246 = vrcp.pop %v244
  %v247 = vrcp.pop %v245
  %v248 = vmul.f32 %v236, %v246
  %v249 = vmul.f32 %v237, %v247
  %v250 = vpack.c.bf16 %v249, %v248
  %v251 = vpack.c.bf16 %v172, %v172
  %v253 = vlaneseq
  %v254 = vshrl.u32 %v253, 7
  %v255 = vsub.s32 0, %v254
  %v256 = vrot.slane %v82, %v255
  %v259 = vsel %vm223, %v250, 0
  %vm261 = vcmask 1043456
  %v263 = vsel %vm261, %v251, 0
  %265 = vmatprep.subr.bf16.mxu0 0
  %266 = vmatpush1.bf16.msra.mxu0 0
  %267 = vmatprep.subr.bf16.mxu0 0
  %268 = vmatpush1.bf16.msra.mxu0 0
  %269 = vmatprep.subr.bf16.mxu0 0
  %270 = vmatpush1.bf16.msra.mxu0 0
  %271 = vmatprep.subr.bf16.mxu0 0
  %272 = vmatpush1.bf16.msra.mxu0 0
  %273 = vmatprep.subr.bf16.mxu0 0
  %274 = vmatpush1.bf16.msra.mxu0 0
  %275 = vmatprep.subr.bf16.mxu0 0
  %276 = vmatpush1.bf16.msra.mxu0 0
  %277 = vmatprep.subr.bf16.mxu0 0
  %278 = vmatpush1.bf16.msra.mxu0 0
  %279 = vmatprep.subr.bf16.mxu0 0
  %280 = vmatpush1.bf16.msra.mxu0 %v263
  %281 = vmatprep.subr.bf16.mxu0 0
  %282 = vmatpush2.bf16.msra.mxu0 0
  %283 = vmatprep.subr.bf16.mxu0 0
  %284 = vmatpush2.bf16.msra.mxu0 0
  %285 = vmatprep.subr.bf16.mxu0 0
  %286 = vmatpush2.bf16.msra.mxu0 0
  %287 = vmatprep.subr.bf16.mxu0 0
  %288 = vmatpush2.bf16.msra.mxu0 0
  %289 = vmatprep.subr.bf16.mxu0 0
  %290 = vmatpush2.bf16.msra.mxu0 0
  %291 = vmatprep.subr.bf16.mxu0 0
  %292 = vmatpush2.bf16.msra.mxu0 0
  %293 = vmatprep.subr.bf16.mxu0 0
  %294 = vmatpush2.bf16.msra.mxu0 0
  %295 = vmatprep.subr.bf16.mxu0 0
  %296 = vmatpush2.bf16.msra.mxu0 0
  %297 = vmatprep.mubr.bf16.mxu0 0
  %298 = vmatmul.mubr.bf16.gmra.mxu0 %v259
  %v299 = vpop.f32.mrf.mxu0
  %v300 = vadd.f32 %v256, %v299
  %v301 = vpop.f32.mrf.mxu0
  %v302 = vpop.f32.mrf.mxu0
  %v303 = vadd.f32 %v256, %v302
  %v304 = vpop.f32.mrf.mxu0
  %305 = vdwg.mxu0
  %v306 = vadd.f32 %v126, 0.0
  %v307 = vadd.f32 %v130, 0.0
  %308 = vset.pattern.permute.xlu0 2
  %309 = vperm.xlu0 %308, %v126
  %v310 = vpop.permute.xlu0 %309
  %312 = vset.pattern.permute.xlu0 2
  %313 = vperm.xlu0 %312, %v130
  %v314 = vpop.permute.xlu0 %313
  %318 = vset.pattern.permute.xlu0 1
  %319 = vperm.xlu0 %318, %v306
  %v320 = vpop.permute.xlu0 %319
  %321 = vset.pattern.permute.xlu0 1
  %322 = vperm.xlu0 %321, %v307
  %v323 = vpop.permute.xlu0 %322
  %v324 = vlaneseq
  %v325 = vshrl.u32 %v324, 7
  %v326 = vsub.s32 %v193, %v325
  %v327 = vrot.slane %v320, %v326
  %v328 = vadd.s32 %v193, 4294967288
  %v329 = vlaneseq
  %v330 = vshrl.u32 %v329, 7
  %v331 = vsub.s32 %v328, %v330
  %v332 = vrot.slane %v323, %v331
  %vm333 = vcmask 130112
  %v334 = vsel %vm333, %v332, %v327
  %v335 = vsel %vm198, %v334, %v334
  %v336 = vsel %vm200, %v334, %v335
  %v337 = vsel %vm202, %v334, %v336
  %v338 = vsel %vm204, %v334, %v337
  %v339 = vsel %vm206, %v334, %v338
  %v340 = vsel %vm208, %v334, %v339
  %v342 = vadd.f32 %v310, %v340
  %v343 = vadd.f32 %v314, %v340
  %vm344 = vcmp.gt.f32.partialorder %v342, 0.0
  %vm345 = vcmp.gt.f32.partialorder %v343, 0.0
  %v346 = vmul.f32 %v342, 0.2
  %v347 = vmul.f32 %v343, 0.2
  %v348 = vsel %vm344, %v342, %v346
  %v349 = vsel %vm345, %v343, %v347
  %vm350 = vcmp.gt.f32.partialorder %v56, 0.0
  %vm351 = vcmp.gt.f32.partialorder %v57, 0.0
  %v352 = vsel %vm350, %v348, -1e+30
  %v353 = vsel %vm351, %v349, -1e+30
  %v354 = vsel %vm58, %v352, -inf
  %355 = vmax.xlane.f32.xlu0 %v354
  %v356 = vpop.xlane.xlu0 %355
  %v357 = vsel %vm58, %v353, -inf
  %358 = vmax.xlane.f32.xlu0 %v357
  %v359 = vpop.xlane.xlu0 %358
  %v360 = vsub.f32 %v352, %v356
  %v361 = vsub.f32 %v353, %v359
  %v362 = vmul.f32 %v360, 1.442695
  %v363 = vpow.pop %v362
  %v364 = vmul.f32 %v361, 1.442695
  %v365 = vpow.pop %v364
  %v366 = vmul.f32 %v56, %v363
  %v367 = vmul.f32 %v57, %v365
  %v368 = vsel %vm58, %v366, 0.0
  %369 = vadd.xlane.f32.xlu0 %v368
  %v370 = vpop.xlane.xlu0 %369
  %v371 = vsel %vm58, %v367, 0.0
  %372 = vadd.xlane.f32.xlu0 %v371
  %v373 = vpop.xlane.xlu0 %372
  %v374 = vmax.f32 %v370, 1e-30
  %v375 = vmax.f32 %v373, 1e-30
  %v376 = vrcp.pop %v374
  %v377 = vrcp.pop %v375
  %v378 = vmul.f32 %v366, %v376
  %v379 = vmul.f32 %v367, %v377
  %v380 = vpack.c.bf16 %v379, %v378
  %v381 = vpack.c.bf16 %v128, %v124
  %382 = vrot.lane.b32.xlu0 %v256, 96
  %v383 = vpop.permute.xlu0 %382
  %v386 = vsel %vm58, %v380, 0
  %388 = vmatprep.subr.bf16.mxu0 0
  %389 = vmatpush1.bf16.msra.mxu0 0
  %390 = vmatprep.subr.bf16.mxu0 0
  %391 = vmatpush1.bf16.msra.mxu0 0
  %392 = vmatprep.subr.bf16.mxu0 0
  %393 = vmatpush1.bf16.msra.mxu0 0
  %394 = vmatprep.subr.bf16.mxu0 0
  %395 = vmatpush1.bf16.msra.mxu0 0
  %396 = vmatprep.subr.bf16.mxu0 0
  %397 = vmatpush1.bf16.msra.mxu0 0
  %398 = vmatprep.subr.bf16.mxu0 0
  %399 = vmatpush1.bf16.msra.mxu0 0
  %400 = vmatprep.subr.bf16.mxu0 0
  %401 = vmatpush1.bf16.msra.mxu0 0
  %402 = vmatprep.subr.bf16.mxu0 0
  %403 = vmatpush1.bf16.msra.mxu0 %v381
  %404 = vmatprep.subr.bf16.mxu0 0
  %405 = vmatpush2.bf16.msra.mxu0 0
  %406 = vmatprep.subr.bf16.mxu0 0
  %407 = vmatpush2.bf16.msra.mxu0 0
  %408 = vmatprep.subr.bf16.mxu0 0
  %409 = vmatpush2.bf16.msra.mxu0 0
  %410 = vmatprep.subr.bf16.mxu0 0
  %411 = vmatpush2.bf16.msra.mxu0 0
  %412 = vmatprep.subr.bf16.mxu0 0
  %413 = vmatpush2.bf16.msra.mxu0 0
  %414 = vmatprep.subr.bf16.mxu0 0
  %415 = vmatpush2.bf16.msra.mxu0 0
  %416 = vmatprep.subr.bf16.mxu0 0
  %417 = vmatpush2.bf16.msra.mxu0 0
  %418 = vmatprep.subr.bf16.mxu0 0
  %419 = vmatpush2.bf16.msra.mxu0 0
  %420 = vmatprep.mubr.bf16.mxu0 0
  %421 = vmatmul.mubr.bf16.gmra.mxu0 %v386
  %v422 = vpop.f32.mrf.mxu0
  %v423 = vadd.f32 %v383, %v422
  %v424 = vpop.f32.mrf.mxu0
  %v425 = vpop.f32.mrf.mxu0
  %v426 = vadd.f32 %v383, %v425
  %v427 = vpop.f32.mrf.mxu0
  %428 = vdwg.mxu0
  %430 = vrot.lane.b32.xlu0 %v381, 96
  %v431 = vpop.permute.xlu0 %430
  %v434 = vsel %vm58, %v74, 0
  %436 = vmatprep.subr.bf16.mxu0 0
  %437 = vmatpush1.bf16.msra.mxu0 0
  %438 = vmatprep.subr.bf16.mxu0 0
  %439 = vmatpush1.bf16.msra.mxu0 0
  %440 = vmatprep.subr.bf16.mxu0 0
  %441 = vmatpush1.bf16.msra.mxu0 0
  %442 = vmatprep.subr.bf16.mxu0 0
  %443 = vmatpush1.bf16.msra.mxu0 0
  %444 = vmatprep.subr.bf16.mxu0 0
  %445 = vmatpush1.bf16.msra.mxu0 0
  %446 = vmatprep.subr.bf16.mxu0 0
  %447 = vmatpush1.bf16.msra.mxu0 0
  %448 = vmatprep.subr.bf16.mxu0 0
  %449 = vmatpush1.bf16.msra.mxu0 0
  %450 = vmatprep.subr.bf16.mxu0 0
  %451 = vmatpush1.bf16.msra.mxu0 %v431
  %452 = vmatprep.subr.bf16.mxu0 0
  %453 = vmatpush2.bf16.msra.mxu0 0
  %454 = vmatprep.subr.bf16.mxu0 0
  %455 = vmatpush2.bf16.msra.mxu0 0
  %456 = vmatprep.subr.bf16.mxu0 0
  %457 = vmatpush2.bf16.msra.mxu0 0
  %458 = vmatprep.subr.bf16.mxu0 0
  %459 = vmatpush2.bf16.msra.mxu0 0
  %460 = vmatprep.subr.bf16.mxu0 0
  %461 = vmatpush2.bf16.msra.mxu0 0
  %462 = vmatprep.subr.bf16.mxu0 0
  %463 = vmatpush2.bf16.msra.mxu0 0
  %464 = vmatprep.subr.bf16.mxu0 0
  %465 = vmatpush2.bf16.msra.mxu0 0
  %466 = vmatprep.subr.bf16.mxu0 0
  %467 = vmatpush2.bf16.msra.mxu0 0
  %468 = vmatprep.mubr.bf16.mxu0 0
  %469 = vmatmul.mubr.bf16.gmra.mxu0 %v434
  %v470 = vpop.f32.mrf.mxu0
  %v471 = vadd.f32 0.0, %v470
  %v472 = vpop.f32.mrf.mxu0
  %v473 = vpop.f32.mrf.mxu0
  %v474 = vadd.f32 0.0, %v473
  %v475 = vpop.f32.mrf.mxu0
  %476 = vdwg.mxu0
  %v477 = vmul.f32 %v471, %v67
  %v478 = vmul.f32 %v474, %v68
  %479 = vrot.lane.b32.xlu0 %v256, 64
  %v480 = vpop.permute.xlu0 %479
  %v482 = vadd.f32 %v477, %v480
  %v483 = vadd.f32 %v478, %v480
  %486 = vrot.lane.b32.xlu0 %v124, 64
  %v487 = vpop.permute.xlu0 %486
  %488 = vrot.lane.b32.xlu0 %v128, 64
  %v489 = vpop.permute.xlu0 %488
  %v492 = vadd.f32 %v482, %v487
  %v493 = vadd.f32 %v483, %v489
  %494 = vrot.lane.b32.xlu0 %v381, 32
  %v495 = vpop.permute.xlu0 %494
  %v498 = vsel %vm58, %v75, 0
  %500 = vmatprep.subr.bf16.mxu0 0
  %501 = vmatpush1.bf16.msra.mxu0 0
  %502 = vmatprep.subr.bf16.mxu0 0
  %503 = vmatpush1.bf16.msra.mxu0 0
  %504 = vmatprep.subr.bf16.mxu0 0
  %505 = vmatpush1.bf16.msra.mxu0 0
  %506 = vmatprep.subr.bf16.mxu0 0
  %507 = vmatpush1.bf16.msra.mxu0 0
  %508 = vmatprep.subr.bf16.mxu0 0
  %509 = vmatpush1.bf16.msra.mxu0 0
  %510 = vmatprep.subr.bf16.mxu0 0
  %511 = vmatpush1.bf16.msra.mxu0 0
  %512 = vmatprep.subr.bf16.mxu0 0
  %513 = vmatpush1.bf16.msra.mxu0 0
  %514 = vmatprep.subr.bf16.mxu0 0
  %515 = vmatpush1.bf16.msra.mxu0 %v495
  %516 = vmatprep.subr.bf16.mxu0 0
  %517 = vmatpush2.bf16.msra.mxu0 0
  %518 = vmatprep.subr.bf16.mxu0 0
  %519 = vmatpush2.bf16.msra.mxu0 0
  %520 = vmatprep.subr.bf16.mxu0 0
  %521 = vmatpush2.bf16.msra.mxu0 0
  %522 = vmatprep.subr.bf16.mxu0 0
  %523 = vmatpush2.bf16.msra.mxu0 0
  %524 = vmatprep.subr.bf16.mxu0 0
  %525 = vmatpush2.bf16.msra.mxu0 0
  %526 = vmatprep.subr.bf16.mxu0 0
  %527 = vmatpush2.bf16.msra.mxu0 0
  %528 = vmatprep.subr.bf16.mxu0 0
  %529 = vmatpush2.bf16.msra.mxu0 0
  %530 = vmatprep.subr.bf16.mxu0 0
  %531 = vmatpush2.bf16.msra.mxu0 0
  %532 = vmatprep.mubr.bf16.mxu0 0
  %533 = vmatmul.mubr.bf16.gmra.mxu0 %v498
  %v534 = vpop.f32.mrf.mxu0
  %v535 = vadd.f32 0.0, %v534
  %v536 = vpop.f32.mrf.mxu0
  %v537 = vpop.f32.mrf.mxu0
  %v538 = vpop.f32.mrf.mxu0
  %539 = vdwg.mxu0
  %v540 = vmul.f32 %v535, %v73
  %541 = vrot.lane.b32.xlu0 %v256, 32
  %v542 = vpop.permute.xlu0 %541
  %v544 = vadd.f32 %v540, %v542
  %546 = vrot.lane.b32.xlu0 %v172, 96
  %v547 = vpop.permute.xlu0 %546
  %v549 = vadd.f32 %v544, %v547
  %v550 = vadd.f32 %v300, %v423
  %v551 = vadd.f32 %v303, %v426
  %v552 = vadd.f32 %v550, %v492
  %v553 = vadd.f32 %v551, %v493
  %v554 = vmax.f32 %v552, 0.0
  %v555 = vmax.f32 %v553, 0.0
  %v556 = vmax.f32 %v549, 0.0
  %v557 = vld [vmem:[%s9] sm:$0xff]
  %v558 = vld [vmem:[%s9 + $0x8] sm:$0xff]
  %v559 = vld [vmem:[%s9 + $0x10] sm:$0xff]
  %v560 = vld [vmem:[%s9 + $0x18] sm:$0xff]
  %v561 = vld [vmem:[%s9 + $0x20] sm:$0xff]
  %v562 = vld [vmem:[%s9 + $0x28] sm:$0xff]
  %v563 = vld [vmem:[%s9 + $0x30] sm:$0xff]
  %v564 = vld [vmem:[%s9 + $0x38] sm:$0xff]
  %v565 = vld [vmem:[%s10] sm:$0xff]
  %v566 = vld [vmem:[%s10 + $0x8] sm:$0xff]
  %v567 = vld [vmem:[%s10 + $0x10] sm:$0xff]
  %v568 = vld [vmem:[%s10 + $0x18] sm:$0xff]
  %v569 = vld [vmem:[%s11] sm:$0x1]
  %v570 = vpack.c.bf16 %v555, %v554
  %v571 = vpack.c.bf16 %v559, %v557
  %v572 = vpack.c.bf16 %v560, %v558
  %v573 = vpack.c.bf16 %v563, %v561
  %v574 = vpack.c.bf16 %v564, %v562
  %vm575 = vcmask 261120
  %v577 = vsel %vm575, %v570, 0
  %579 = vmatprep.subr.bf16.mxu0 0
  %580 = vmatpush1.bf16.msra.mxu0 0
  %581 = vmatprep.subr.bf16.mxu0 0
  %582 = vmatpush1.bf16.msra.mxu0 0
  %583 = vmatprep.subr.bf16.mxu0 0
  %584 = vmatpush1.bf16.msra.mxu0 0
  %585 = vmatprep.subr.bf16.mxu0 0
  %586 = vmatpush1.bf16.msra.mxu0 0
  %587 = vmatprep.subr.bf16.mxu0 0
  %588 = vmatpush1.bf16.msra.mxu0 0
  %589 = vmatprep.subr.bf16.mxu0 0
  %590 = vmatpush1.bf16.msra.mxu0 0
  %591 = vmatprep.subr.bf16.mxu0 %v574
  %592 = vmatpush1.bf16.msra.mxu0 %v573
  %593 = vmatprep.subr.bf16.mxu0 %v572
  %594 = vmatpush1.bf16.msra.mxu0 %v571
  %595 = vmatprep.subr.bf16.mxu0 0
  %596 = vmatpush2.bf16.msra.mxu0 0
  %597 = vmatprep.subr.bf16.mxu0 0
  %598 = vmatpush2.bf16.msra.mxu0 0
  %599 = vmatprep.subr.bf16.mxu0 0
  %600 = vmatpush2.bf16.msra.mxu0 0
  %601 = vmatprep.subr.bf16.mxu0 0
  %602 = vmatpush2.bf16.msra.mxu0 0
  %603 = vmatprep.subr.bf16.mxu0 0
  %604 = vmatpush2.bf16.msra.mxu0 0
  %605 = vmatprep.subr.bf16.mxu0 0
  %606 = vmatpush2.bf16.msra.mxu0 0
  %607 = vmatprep.subr.bf16.mxu0 0
  %608 = vmatpush2.bf16.msra.mxu0 0
  %609 = vmatprep.subr.bf16.mxu0 0
  %610 = vmatpush2.bf16.msra.mxu0 0
  %611 = vmatprep.mubr.bf16.mxu0 0
  %612 = vmatmul.mubr.bf16.gmra.mxu0 %v577
  %v613 = vpop.f32.mrf.mxu0
  %v614 = vadd.f32 0.0, %v613
  %v615 = vpop.f32.mrf.mxu0
  %v616 = vadd.f32 0.0, %v615
  %v617 = vpop.f32.mrf.mxu0
  %v618 = vadd.f32 0.0, %v617
  %v619 = vpop.f32.mrf.mxu0
  %v620 = vadd.f32 0.0, %v619
  %621 = vdwg.mxu0
  %v622 = vpack.c.bf16 %v556, %v556
  %v623 = vpack.c.bf16 %v566, %v565
  %v624 = vpack.c.bf16 %v568, %v567
  %v626 = vsel %vm575, %v622, 0
  %628 = vmatprep.subr.bf16.mxu0 0
  %629 = vmatpush1.bf16.msra.mxu0 0
  %630 = vmatprep.subr.bf16.mxu0 0
  %631 = vmatpush1.bf16.msra.mxu0 0
  %632 = vmatprep.subr.bf16.mxu0 0
  %633 = vmatpush1.bf16.msra.mxu0 0
  %634 = vmatprep.subr.bf16.mxu0 0
  %635 = vmatpush1.bf16.msra.mxu0 0
  %636 = vmatprep.subr.bf16.mxu0 0
  %637 = vmatpush1.bf16.msra.mxu0 0
  %638 = vmatprep.subr.bf16.mxu0 0
  %639 = vmatpush1.bf16.msra.mxu0 0
  %640 = vmatprep.subr.bf16.mxu0 0
  %641 = vmatpush1.bf16.msra.mxu0 %v624
  %642 = vmatprep.subr.bf16.mxu0 0
  %643 = vmatpush1.bf16.msra.mxu0 %v623
  %644 = vmatprep.subr.bf16.mxu0 0
  %645 = vmatpush2.bf16.msra.mxu0 0
  %646 = vmatprep.subr.bf16.mxu0 0
  %647 = vmatpush2.bf16.msra.mxu0 0
  %648 = vmatprep.subr.bf16.mxu0 0
  %649 = vmatpush2.bf16.msra.mxu0 0
  %650 = vmatprep.subr.bf16.mxu0 0
  %651 = vmatpush2.bf16.msra.mxu0 0
  %652 = vmatprep.subr.bf16.mxu0 0
  %653 = vmatpush2.bf16.msra.mxu0 0
  %654 = vmatprep.subr.bf16.mxu0 0
  %655 = vmatpush2.bf16.msra.mxu0 0
  %656 = vmatprep.subr.bf16.mxu0 0
  %657 = vmatpush2.bf16.msra.mxu0 0
  %658 = vmatprep.subr.bf16.mxu0 0
  %659 = vmatpush2.bf16.msra.mxu0 0
  %660 = vmatprep.mubr.bf16.mxu0 0
  %661 = vmatmul.mubr.bf16.gmra.mxu0 %v626
  %v662 = vpop.f32.mrf.mxu0
  %v663 = vadd.f32 0.0, %v662
  %v664 = vpop.f32.mrf.mxu0
  %v665 = vpop.f32.mrf.mxu0
  %v666 = vpop.f32.mrf.mxu0
  %667 = vdwg.mxu0
  %v668 = vadd.f32 %v663, 0.0
  %670 = vset.pattern.permute.xlu0 0
  %671 = vperm.xlu0 %670, %v616
  %v672 = vpop.permute.xlu0 %671
  %675 = vset.pattern.permute.xlu0 0
  %676 = vperm.xlu0 %675, %v620
  %v677 = vpop.permute.xlu0 %676
  %680 = vset.pattern.permute.xlu0 64
  %681 = vperm.xlu0 %680, %v668
  %v682 = vpop.permute.xlu0 %681
  %v683 = vlaneseq
  %v684 = vshrl.u32 %v683, 7
  %v685 = vsub.s32 %v193, %v684
  %v686 = vrot.slane %v682, %v685
  %v687 = vsel %vm198, %v686, %v686
  %v688 = vsel %vm200, %v686, %v687
  %v689 = vsel %vm202, %v686, %v688
  %v690 = vsel %vm204, %v686, %v689
  %v691 = vsel %vm206, %v686, %v690
  %v692 = vsel %vm208, %v686, %v691
  %v694 = vadd.f32 %v672, %v692
  %v695 = vadd.f32 %v677, %v692
  %vm696 = vcmp.gt.f32.partialorder %v694, 0.0
  %vm697 = vcmp.gt.f32.partialorder %v695, 0.0
  %v698 = vmul.f32 %v694, 0.2
  %v699 = vmul.f32 %v695, 0.2
  %v700 = vsel %vm696, %v694, %v698
  %v701 = vsel %vm697, %v695, %v699
  %v702 = vsel %vm219, %v700, -1e+30
  %v703 = vsel %vm220, %v701, -1e+30
  %v704 = vsel %vm223, %v702, -inf
  %705 = vmax.xlane.f32.xlu0 %v704
  %v706 = vpop.xlane.xlu0 %705
  %v707 = vsel %vm223, %v703, -inf
  %708 = vmax.xlane.f32.xlu0 %v707
  %v709 = vpop.xlane.xlu0 %708
  %v710 = vsub.f32 %v702, %v706
  %v711 = vsub.f32 %v703, %v709
  %v712 = vmul.f32 %v710, 1.442695
  %v713 = vpow.pop %v712
  %v714 = vmul.f32 %v711, 1.442695
  %v715 = vpow.pop %v714
  %v716 = vmul.f32 %v51, %v713
  %v717 = vmul.f32 %v52, %v715
  %v718 = vsel %vm223, %v716, 0.0
  %719 = vadd.xlane.f32.xlu0 %v718
  %v720 = vpop.xlane.xlu0 %719
  %v721 = vsel %vm223, %v717, 0.0
  %722 = vadd.xlane.f32.xlu0 %v721
  %v723 = vpop.xlane.xlu0 %722
  %v724 = vmax.f32 %v720, 1e-30
  %v725 = vmax.f32 %v723, 1e-30
  %v726 = vrcp.pop %v724
  %v727 = vrcp.pop %v725
  %v728 = vmul.f32 %v716, %v726
  %v729 = vmul.f32 %v717, %v727
  %v730 = vpack.c.bf16 %v729, %v728
  %v731 = vpack.c.bf16 %v663, %v663
  %v733 = vlaneseq
  %v734 = vshrl.u32 %v733, 7
  %v735 = vsub.s32 0, %v734
  %v736 = vrot.slane %v569, %v735
  %v739 = vsel %vm223, %v730, 0
  %v742 = vsel %vm261, %v731, 0
  %744 = vmatprep.subr.bf16.mxu0 0
  %745 = vmatpush1.bf16.msra.mxu0 0
  %746 = vmatprep.subr.bf16.mxu0 0
  %747 = vmatpush1.bf16.msra.mxu0 0
  %748 = vmatprep.subr.bf16.mxu0 0
  %749 = vmatpush1.bf16.msra.mxu0 0
  %750 = vmatprep.subr.bf16.mxu0 0
  %751 = vmatpush1.bf16.msra.mxu0 0
  %752 = vmatprep.subr.bf16.mxu0 0
  %753 = vmatpush1.bf16.msra.mxu0 0
  %754 = vmatprep.subr.bf16.mxu0 0
  %755 = vmatpush1.bf16.msra.mxu0 0
  %756 = vmatprep.subr.bf16.mxu0 0
  %757 = vmatpush1.bf16.msra.mxu0 0
  %758 = vmatprep.subr.bf16.mxu0 0
  %759 = vmatpush1.bf16.msra.mxu0 %v742
  %760 = vmatprep.subr.bf16.mxu0 0
  %761 = vmatpush2.bf16.msra.mxu0 0
  %762 = vmatprep.subr.bf16.mxu0 0
  %763 = vmatpush2.bf16.msra.mxu0 0
  %764 = vmatprep.subr.bf16.mxu0 0
  %765 = vmatpush2.bf16.msra.mxu0 0
  %766 = vmatprep.subr.bf16.mxu0 0
  %767 = vmatpush2.bf16.msra.mxu0 0
  %768 = vmatprep.subr.bf16.mxu0 0
  %769 = vmatpush2.bf16.msra.mxu0 0
  %770 = vmatprep.subr.bf16.mxu0 0
  %771 = vmatpush2.bf16.msra.mxu0 0
  %772 = vmatprep.subr.bf16.mxu0 0
  %773 = vmatpush2.bf16.msra.mxu0 0
  %774 = vmatprep.subr.bf16.mxu0 0
  %775 = vmatpush2.bf16.msra.mxu0 0
  %776 = vmatprep.mubr.bf16.mxu0 0
  %777 = vmatmul.mubr.bf16.gmra.mxu0 %v739
  %v778 = vpop.f32.mrf.mxu0
  %v779 = vadd.f32 %v736, %v778
  %v780 = vpop.f32.mrf.mxu0
  %v781 = vpop.f32.mrf.mxu0
  %v782 = vadd.f32 %v736, %v781
  %v783 = vpop.f32.mrf.mxu0
  %784 = vdwg.mxu0
  %v785 = vadd.f32 %v616, 0.0
  %v786 = vadd.f32 %v620, 0.0
  %787 = vset.pattern.permute.xlu0 2
  %788 = vperm.xlu0 %787, %v616
  %v789 = vpop.permute.xlu0 %788
  %791 = vset.pattern.permute.xlu0 2
  %792 = vperm.xlu0 %791, %v620
  %v793 = vpop.permute.xlu0 %792
  %797 = vset.pattern.permute.xlu0 1
  %798 = vperm.xlu0 %797, %v785
  %v799 = vpop.permute.xlu0 %798
  %800 = vset.pattern.permute.xlu0 1
  %801 = vperm.xlu0 %800, %v786
  %v802 = vpop.permute.xlu0 %801
  %v803 = vlaneseq
  %v804 = vshrl.u32 %v803, 7
  %v805 = vsub.s32 %v193, %v804
  %v806 = vrot.slane %v799, %v805
  %v807 = vlaneseq
  %v808 = vshrl.u32 %v807, 7
  %v809 = vsub.s32 %v328, %v808
  %v810 = vrot.slane %v802, %v809
  %v811 = vsel %vm333, %v810, %v806
  %v812 = vsel %vm198, %v811, %v811
  %v813 = vsel %vm200, %v811, %v812
  %v814 = vsel %vm202, %v811, %v813
  %v815 = vsel %vm204, %v811, %v814
  %v816 = vsel %vm206, %v811, %v815
  %v817 = vsel %vm208, %v811, %v816
  %v819 = vadd.f32 %v789, %v817
  %v820 = vadd.f32 %v793, %v817
  %vm821 = vcmp.gt.f32.partialorder %v819, 0.0
  %vm822 = vcmp.gt.f32.partialorder %v820, 0.0
  %v823 = vmul.f32 %v819, 0.2
  %v824 = vmul.f32 %v820, 0.2
  %v825 = vsel %vm821, %v819, %v823
  %v826 = vsel %vm822, %v820, %v824
  %v827 = vsel %vm350, %v825, -1e+30
  %v828 = vsel %vm351, %v826, -1e+30
  %v829 = vsel %vm58, %v827, -inf
  %830 = vmax.xlane.f32.xlu0 %v829
  %v831 = vpop.xlane.xlu0 %830
  %v832 = vsel %vm58, %v828, -inf
  %833 = vmax.xlane.f32.xlu0 %v832
  %v834 = vpop.xlane.xlu0 %833
  %v835 = vsub.f32 %v827, %v831
  %v836 = vsub.f32 %v828, %v834
  %v837 = vmul.f32 %v835, 1.442695
  %v838 = vpow.pop %v837
  %v839 = vmul.f32 %v836, 1.442695
  %v840 = vpow.pop %v839
  %v841 = vmul.f32 %v56, %v838
  %v842 = vmul.f32 %v57, %v840
  %v843 = vsel %vm58, %v841, 0.0
  %844 = vadd.xlane.f32.xlu0 %v843
  %v845 = vpop.xlane.xlu0 %844
  %v846 = vsel %vm58, %v842, 0.0
  %847 = vadd.xlane.f32.xlu0 %v846
  %v848 = vpop.xlane.xlu0 %847
  %v849 = vmax.f32 %v845, 1e-30
  %v850 = vmax.f32 %v848, 1e-30
  %v851 = vrcp.pop %v849
  %v852 = vrcp.pop %v850
  %v853 = vmul.f32 %v841, %v851
  %v854 = vmul.f32 %v842, %v852
  %v855 = vpack.c.bf16 %v854, %v853
  %v856 = vpack.c.bf16 %v618, %v614
  %857 = vrot.lane.b32.xlu0 %v736, 96
  %v858 = vpop.permute.xlu0 %857
  %v861 = vsel %vm58, %v855, 0
  %863 = vmatprep.subr.bf16.mxu0 0
  %864 = vmatpush1.bf16.msra.mxu0 0
  %865 = vmatprep.subr.bf16.mxu0 0
  %866 = vmatpush1.bf16.msra.mxu0 0
  %867 = vmatprep.subr.bf16.mxu0 0
  %868 = vmatpush1.bf16.msra.mxu0 0
  %869 = vmatprep.subr.bf16.mxu0 0
  %870 = vmatpush1.bf16.msra.mxu0 0
  %871 = vmatprep.subr.bf16.mxu0 0
  %872 = vmatpush1.bf16.msra.mxu0 0
  %873 = vmatprep.subr.bf16.mxu0 0
  %874 = vmatpush1.bf16.msra.mxu0 0
  %875 = vmatprep.subr.bf16.mxu0 0
  %876 = vmatpush1.bf16.msra.mxu0 0
  %877 = vmatprep.subr.bf16.mxu0 0
  %878 = vmatpush1.bf16.msra.mxu0 %v856
  %879 = vmatprep.subr.bf16.mxu0 0
  %880 = vmatpush2.bf16.msra.mxu0 0
  %881 = vmatprep.subr.bf16.mxu0 0
  %882 = vmatpush2.bf16.msra.mxu0 0
  %883 = vmatprep.subr.bf16.mxu0 0
  %884 = vmatpush2.bf16.msra.mxu0 0
  %885 = vmatprep.subr.bf16.mxu0 0
  %886 = vmatpush2.bf16.msra.mxu0 0
  %887 = vmatprep.subr.bf16.mxu0 0
  %888 = vmatpush2.bf16.msra.mxu0 0
  %889 = vmatprep.subr.bf16.mxu0 0
  %890 = vmatpush2.bf16.msra.mxu0 0
  %891 = vmatprep.subr.bf16.mxu0 0
  %892 = vmatpush2.bf16.msra.mxu0 0
  %893 = vmatprep.subr.bf16.mxu0 0
  %894 = vmatpush2.bf16.msra.mxu0 0
  %895 = vmatprep.mubr.bf16.mxu0 0
  %896 = vmatmul.mubr.bf16.gmra.mxu0 %v861
  %v897 = vpop.f32.mrf.mxu0
  %v898 = vadd.f32 %v858, %v897
  %v899 = vpop.f32.mrf.mxu0
  %v900 = vpop.f32.mrf.mxu0
  %v901 = vadd.f32 %v858, %v900
  %v902 = vpop.f32.mrf.mxu0
  %903 = vdwg.mxu0
  %905 = vrot.lane.b32.xlu0 %v856, 96
  %v906 = vpop.permute.xlu0 %905
  %908 = vmatprep.subr.bf16.mxu0 0
  %909 = vmatpush1.bf16.msra.mxu0 0
  %910 = vmatprep.subr.bf16.mxu0 0
  %911 = vmatpush1.bf16.msra.mxu0 0
  %912 = vmatprep.subr.bf16.mxu0 0
  %913 = vmatpush1.bf16.msra.mxu0 0
  %914 = vmatprep.subr.bf16.mxu0 0
  %915 = vmatpush1.bf16.msra.mxu0 0
  %916 = vmatprep.subr.bf16.mxu0 0
  %917 = vmatpush1.bf16.msra.mxu0 0
  %918 = vmatprep.subr.bf16.mxu0 0
  %919 = vmatpush1.bf16.msra.mxu0 0
  %920 = vmatprep.subr.bf16.mxu0 0
  %921 = vmatpush1.bf16.msra.mxu0 0
  %922 = vmatprep.subr.bf16.mxu0 0
  %923 = vmatpush1.bf16.msra.mxu0 %v906
  %924 = vmatprep.subr.bf16.mxu0 0
  %925 = vmatpush2.bf16.msra.mxu0 0
  %926 = vmatprep.subr.bf16.mxu0 0
  %927 = vmatpush2.bf16.msra.mxu0 0
  %928 = vmatprep.subr.bf16.mxu0 0
  %929 = vmatpush2.bf16.msra.mxu0 0
  %930 = vmatprep.subr.bf16.mxu0 0
  %931 = vmatpush2.bf16.msra.mxu0 0
  %932 = vmatprep.subr.bf16.mxu0 0
  %933 = vmatpush2.bf16.msra.mxu0 0
  %934 = vmatprep.subr.bf16.mxu0 0
  %935 = vmatpush2.bf16.msra.mxu0 0
  %936 = vmatprep.subr.bf16.mxu0 0
  %937 = vmatpush2.bf16.msra.mxu0 0
  %938 = vmatprep.subr.bf16.mxu0 0
  %939 = vmatpush2.bf16.msra.mxu0 0
  %940 = vmatprep.mubr.bf16.mxu0 0
  %941 = vmatmul.mubr.bf16.gmra.mxu0 %v434
  %v942 = vpop.f32.mrf.mxu0
  %v943 = vadd.f32 0.0, %v942
  %v944 = vpop.f32.mrf.mxu0
  %v945 = vpop.f32.mrf.mxu0
  %v946 = vadd.f32 0.0, %v945
  %v947 = vpop.f32.mrf.mxu0
  %948 = vdwg.mxu0
  %v949 = vmul.f32 %v943, %v67
  %v950 = vmul.f32 %v946, %v68
  %951 = vrot.lane.b32.xlu0 %v736, 64
  %v952 = vpop.permute.xlu0 %951
  %v954 = vadd.f32 %v949, %v952
  %v955 = vadd.f32 %v950, %v952
  %958 = vrot.lane.b32.xlu0 %v614, 64
  %v959 = vpop.permute.xlu0 %958
  %960 = vrot.lane.b32.xlu0 %v618, 64
  %v961 = vpop.permute.xlu0 %960
  %v964 = vadd.f32 %v954, %v959
  %v965 = vadd.f32 %v955, %v961
  %v966 = vadd.f32 %v779, %v898
  %v967 = vadd.f32 %v782, %v901
  %v968 = vadd.f32 %v966, %v964
  %v969 = vadd.f32 %v967, %v965
  %v970 = vmax.f32 %v968, 0.0
  %v971 = vmax.f32 %v969, 0.0
  %v972 = vpack.c.bf16 %v971, %v970
  %v973 = vld [vmem:[%s12] sm:$0xff]
  %v974 = vld [vmem:[%s12 + $0x8] sm:$0xff]
  %v975 = vld [vmem:[%s12 + $0x10] sm:$0xff]
  %v976 = vld [vmem:[%s12 + $0x18] sm:$0xff]
  %v977 = vpack.c.bf16 %v974, %v973
  %v978 = vpack.c.bf16 %v976, %v975
  %v979 = vld [vmem:[%s13] sm:$0x1]
  %v981 = vlaneseq
  %v982 = vshrl.u32 %v981, 7
  %v983 = vsub.s32 0, %v982
  %v984 = vrot.slane %v979, %v983
  %v987 = vsel %vm575, %v972, 0
  %989 = vmatprep.subr.bf16.mxu0 0
  %990 = vmatpush1.bf16.msra.mxu0 0
  %991 = vmatprep.subr.bf16.mxu0 0
  %992 = vmatpush1.bf16.msra.mxu0 0
  %993 = vmatprep.subr.bf16.mxu0 0
  %994 = vmatpush1.bf16.msra.mxu0 0
  %995 = vmatprep.subr.bf16.mxu0 0
  %996 = vmatpush1.bf16.msra.mxu0 0
  %997 = vmatprep.subr.bf16.mxu0 0
  %998 = vmatpush1.bf16.msra.mxu0 0
  %999 = vmatprep.subr.bf16.mxu0 0
  %1000 = vmatpush1.bf16.msra.mxu0 0
  %1001 = vmatprep.subr.bf16.mxu0 0
  %1002 = vmatpush1.bf16.msra.mxu0 %v978
  %1003 = vmatprep.subr.bf16.mxu0 0
  %1004 = vmatpush1.bf16.msra.mxu0 %v977
  %1005 = vmatprep.subr.bf16.mxu0 0
  %1006 = vmatpush2.bf16.msra.mxu0 0
  %1007 = vmatprep.subr.bf16.mxu0 0
  %1008 = vmatpush2.bf16.msra.mxu0 0
  %1009 = vmatprep.subr.bf16.mxu0 0
  %1010 = vmatpush2.bf16.msra.mxu0 0
  %1011 = vmatprep.subr.bf16.mxu0 0
  %1012 = vmatpush2.bf16.msra.mxu0 0
  %1013 = vmatprep.subr.bf16.mxu0 0
  %1014 = vmatpush2.bf16.msra.mxu0 0
  %1015 = vmatprep.subr.bf16.mxu0 0
  %1016 = vmatpush2.bf16.msra.mxu0 0
  %1017 = vmatprep.subr.bf16.mxu0 0
  %1018 = vmatpush2.bf16.msra.mxu0 0
  %1019 = vmatprep.subr.bf16.mxu0 0
  %1020 = vmatpush2.bf16.msra.mxu0 0
  %1021 = vmatprep.mubr.bf16.mxu0 0
  %1022 = vmatmul.mubr.bf16.gmra.mxu0 %v987
  %v1023 = vpop.f32.mrf.mxu0
  %v1024 = vadd.f32 %v984, %v1023
  %v1025 = vpop.f32.mrf.mxu0
  %v1026 = vpop.f32.mrf.mxu0
  %v1027 = vadd.f32 %v984, %v1026
  %v1028 = vpop.f32.mrf.mxu0
  %1029 = vdwg.mxu0
  %1030 = vst [vmem:[%s14] sm:$0xff] %v1024
  %1031 = vst [vmem:[%s14 + $0x8] sm:$0xff] %v1027
  // Predicated region
  $region58: #{hetero_gnn_forward.1} parent=0 // pred_check
    _
  $region59: #{hetero_gnn_forward.1} parent=0 // pred_check_branch
    %1033 = sbr.rel (0) target = $region61
  $region60: #{hetero_gnn_forward.1} parent=0 // pred_region
    _
  $region61: #{hetero_gnn_forward.1} parent=0 // pred_fallthru
    _
  // Predicated region
  $region62: #{hetero_gnn_forward.1} parent=0 // pred_check
    _
  $region63: #{hetero_gnn_forward.1} parent=0 // pred_check_branch
    %1035 = sbr.rel (0) target = $region65
  $region64: #{hetero_gnn_forward.1} parent=0 // pred_region
    _
  $region65: #{hetero_gnn_forward.1} parent=0 // pred_fallthru
    _

</llo_original>
